<compile_context>
chip_gen: v5e
topology: v5e:2x2
jax: 0.10.0
libtpu: 0.0.40
codegen_flags: <defaults>
</compile_context>

<pallas_src>
import functools

import jax
import jax.numpy as jnp
from jax.experimental import pallas as pl
from jax.experimental.pallas import tpu as pltpu

EPS = 1e-12          # LayerNorm eps of the reference implementation
NEG_INF = -10000.0   # additive pad-mask value (matches masked_fill(-10000))


# ----------------------------------------------------------------------------
# Fused encoder-stack kernel
# ----------------------------------------------------------------------------
def _layer_norm(x, gamma, beta):
    mean = jnp.mean(x, axis=-1, keepdims=True)
    var = jnp.mean((x - mean) ** 2, axis=-1, keepdims=True)
    return gamma * (x - mean) * jax.lax.rsqrt(var + EPS) + beta


def _encoder_stack_kernel(x_ref, mask_ref,
                          wqkv_ref, wo_ref, wf1_ref, wf2_ref,
                          bqkv_ref, bf1_ref, vd_ref,
                          out_ref, x_scr, *, n_head):
    """One (batch-block, layer) grid step.

    Grid = (B // Bt, L); the layer axis is innermost ("arbitrary"), so the
    (Bt*S, D) activation carried in `x_scr` stays VMEM resident across all
    layers of a batch block.  vd_ref rows: 0=bo 1=g1 2=be1 3=bf2 4=g2 5=be2.
    """
    l = pl.program_id(1)
    Bt, S, D = x_ref.shape
    H = n_head
    dk = D // H
    M = Bt * S

    # first layer step of this batch block: load the embedding into scratch
    @pl.when(l == 0)
    def _():
        x_scr[...] = x_ref[...].reshape(M, D)

    x = x_scr[...]                          # (M, D) f32, resident across layers
    xb = x.astype(jnp.bfloat16)

    # ---- fused QKV projection: one lane-dense (M, D) @ (D, 3D) matmul --------
    # (1/sqrt(dk) already folded into the Q third of the weights and bias.)
    qkv = jnp.dot(xb, wqkv_ref[...],
                  preferred_element_type=jnp.float32) + bqkv_ref[...]   # (M, 3D)

    # ---- multi-head self-attention --------------------------------------------
    # Score / context matmuls are inherently per-head (contraction dim = dk);
    # a static per-head loop keeps every op a simple single-batch-dim einsum
    # (no in-kernel 4-D transposes) and keeps only one head's (Bt, S, S)
    # scores live at a time.
    # TODO(synk): key-tiled (online-softmax) attention for long sequences.
    mask = mask_ref[...]                                  # (Bt, 1, S) additive
    ctx_heads = []
    for h in range(H):
        q_h = qkv[:, 0 * D + h * dk: 0 * D + (h + 1) * dk]
        k_h = qkv[:, 1 * D + h * dk: 1 * D + (h + 1) * dk]
        v_h = qkv[:, 2 * D + h * dk: 2 * D + (h + 1) * dk]
        q_h = q_h.reshape(Bt, S, dk).astype(jnp.bfloat16)
        k_h = k_h.reshape(Bt, S, dk).astype(jnp.bfloat16)
        v_h = v_h.reshape(Bt, S, dk).astype(jnp.bfloat16)

        s_h = jnp.einsum('bqc,bkc->bqk', q_h, k_h,
                         preferred_element_type=jnp.float32)       # (Bt, S, S)
        s_h = s_h + mask                                           # key padding
        s_h = s_h - jnp.max(s_h, axis=-1, keepdims=True)
        p_h = jnp.exp(s_h)
        p_h = p_h * pl.reciprocal(jnp.sum(p_h, axis=-1, keepdims=True),
                                  approx=True)
        ctx_heads.append(jnp.einsum('bqk,bkc->bqc',
                                    p_h.astype(jnp.bfloat16), v_h,
                                    preferred_element_type=jnp.float32))

    ctx = jnp.concatenate(ctx_heads, axis=-1).reshape(M, D)   # concat over heads

    # single lane-dense output projection on the concatenated heads
    attn = jnp.dot(ctx.astype(jnp.bfloat16), wo_ref[...],
                   preferred_element_type=jnp.float32) + vd_ref[0:1, :]   # + bo

    # ---- add & norm 1 ----------------------------------------------------------
    x1 = _layer_norm(x + attn, vd_ref[1:2, :], vd_ref[2:3, :])

    # ---- position-wise feed-forward (ReLU) -------------------------------------
    # TODO(synk): tile over the hidden (F) axis for very large ffn_hidden.
    h1 = jnp.dot(x1.astype(jnp.bfloat16), wf1_ref[...],
                 preferred_element_type=jnp.float32) + bf1_ref[...]       # (M, F)
    h1 = jnp.maximum(h1, 0.0)
    ffn = jnp.dot(h1.astype(jnp.bfloat16), wf2_ref[...],
                  preferred_element_type=jnp.float32) + vd_ref[3:4, :]    # + bf2

    # ---- add & norm 2 ----------------------------------------------------------
    x2 = _layer_norm(x1 + ffn, vd_ref[4:5, :], vd_ref[5:6, :])

    x_scr[...] = x2                                  # carry to the next layer

    @pl.when(l == pl.num_programs(1) - 1)
    def _():
        out_ref[...] = x2.reshape(Bt, S, D).astype(out_ref.dtype)


def _pick_block_b(B, S, max_rows=1024):
    """Largest divisor of B with Bt*S <= max_rows (keeps the activation tile
    modest) while keeping >= 2 blocks on the parallel batch axis when possible
    (both TensorCores of a v7x megacore get work)."""
    best = 1
    for cand in range(1, B + 1):
        if B % cand == 0 and cand * S <= max_rows:
            best = cand
    if B >= 2 and B // best < 2:
        for cand in range(best - 1, 0, -1):
            if B % cand == 0 and B // cand >= 2:
                return cand
    return best


def _vmem_limit_bytes(bt, S, D, F, H):
    m = bt * S
    weights = 2 * 2 * (3 * D * D + D * D + 2 * D * F)        # bf16, double-buffered
    biases = 2 * 4 * (3 * D + F + 6 * D)
    blocks = 2 * 4 * (2 * bt * S * D + bt * S)               # x + out (+ mask)
    scratch = 4 * m * D
    live = 4 * (m * 3 * D + 2 * bt * S * S + m * D + m * F + 4 * m * D)
    est = int((weights + biases + blocks + scratch + live) * 1.5) + (2 << 20)
    return int(min(max(est, 32 << 20), 64 << 20))


def encoder_stack(x, mask_add, sp, n_head, *, block_b=None):
    B, S, D = x.shape
    L = sp["wqkv"].shape[0]
    F = sp["wf1"].shape[-1]
    assert D % n_head == 0

    if block_b is None:
        block_b = _pick_block_b(B, S)
    assert B % block_b == 0
    grid = (B // block_b, L)

    def wspec(shape):
        zeros = (0,) * len(shape)
        return pl.BlockSpec((None,) + tuple(shape),
                            lambda bb, l, _z=zeros: (l,) + _z)

    kernel = functools.partial(_encoder_stack_kernel, n_head=n_head)

    return pl.pallas_call(
        kernel,
        out_shape=jax.ShapeDtypeStruct((B, S, D), jnp.float32),
        grid=grid,
        in_specs=[
            pl.BlockSpec((block_b, S, D), lambda bb, l: (bb, 0, 0)),   # x
            pl.BlockSpec((block_b, 1, S), lambda bb, l: (bb, 0, 0)),   # mask_add
            wspec((D, 3 * D)),          # wqkv (bf16)
            wspec((D, D)),              # wo   (bf16)
            wspec((D, F)),              # wf1  (bf16)
            wspec((F, D)),              # wf2  (bf16)
            wspec((1, 3 * D)),          # bqkv (f32)
            wspec((1, F)),              # bf1  (f32)
            wspec((6, D)),              # bo,g1,be1,bf2,g2,be2 (f32)
        ],
        out_specs=pl.BlockSpec((block_b, S, D), lambda bb, l: (bb, 0, 0)),
        scratch_shapes=[pltpu.VMEM((block_b * S, D), jnp.float32)],
        compiler_params=pltpu.CompilerParams(
            dimension_semantics=("parallel", "arbitrary"),
            vmem_limit_bytes=_vmem_limit_bytes(block_b, S, D, F, n_head)),
    )(x, mask_add, sp["wqkv"], sp["wo"], sp["wf1"], sp["wf2"],
      sp["bqkv"], sp["bf1"], sp["vecs_d"])


# ----------------------------------------------------------------------------
# Parameter init, layer packing, forward
# ----------------------------------------------------------------------------
def sinusoidal_pos_encoding(max_len, d_model):
    pos = jnp.arange(max_len, dtype=jnp.float32)[:, None]
    i = jnp.arange(0, d_model, 2, dtype=jnp.float32)
    angle = pos / jnp.power(10000.0, i / d_model)
    pe = jnp.zeros((max_len, d_model), dtype=jnp.float32)
    pe = pe.at[:, 0::2].set(jnp.sin(angle))
    pe = pe.at[:, 1::2].set(jnp.cos(angle))
    return pe


def init_encoder_params(key, enc_voc_size, max_len, d_model, ffn_hidden, n_layers):
    keys = jax.random.split(key, 1 + n_layers)
    std = 0.02
    params = {
        "tok_emb": std * jax.random.normal(keys[0], (enc_voc_size, d_model),
                                           dtype=jnp.float32),
        "pos_emb": sinusoidal_pos_encoding(max_len, d_model),
        "layers": [],
    }
    for l in range(n_layers):
        lk = jax.random.split(keys[1 + l], 6)
        params["layers"].append({
            "wq": std * jax.random.normal(lk[0], (d_model, d_model), jnp.float32),
            "bq": jnp.zeros((1, d_model), jnp.float32),
            "wk": std * jax.random.normal(lk[1], (d_model, d_model), jnp.float32),
            "bk": jnp.zeros((1, d_model), jnp.float32),
            "wv": std * jax.random.normal(lk[2], (d_model, d_model), jnp.float32),
            "bv": jnp.zeros((1, d_model), jnp.float32),
            "wo": std * jax.random.normal(lk[3], (d_model, d_model), jnp.float32),
            "bo": jnp.zeros((1, d_model), jnp.float32),
            "g1": jnp.ones((1, d_model), jnp.float32),
            "be1": jnp.zeros((1, d_model), jnp.float32),
            "wf1": std * jax.random.normal(lk[4], (d_model, ffn_hidden), jnp.float32),
            "bf1": jnp.zeros((1, ffn_hidden), jnp.float32),
            "wf2": std * jax.random.normal(lk[5], (ffn_hidden, d_model), jnp.float32),
            "bf2": jnp.zeros((1, d_model), jnp.float32),
            "g2": jnp.ones((1, d_model), jnp.float32),
            "be2": jnp.zeros((1, d_model), jnp.float32),
        })
    return params


def pack_layer_params(layers, n_head):
    """Stack per-layer params along L, fuse QKV, fold the 1/sqrt(dk) score
    scale into Wq/bq, cast matmul weights to bf16 and pack the small per-layer
    vectors into a single (L, 6, D) array."""
    D = layers[0]["wq"].shape[0]
    dk = D // n_head
    scale = 1.0 / (dk ** 0.5)

    def stk(name):
        return jnp.stack([lyr[name] for lyr in layers], axis=0)

    wq, wk, wv = stk("wq") * scale, stk("wk"), stk("wv")        # (L, D, D) f32
    bq, bk, bv = stk("bq") * scale, stk("bk"), stk("bv")        # (L, 1, D) f32

    wqkv = jnp.concatenate([wq, wk, wv], axis=-1).astype(jnp.bfloat16)  # (L,D,3D)
    bqkv = jnp.concatenate([bq, bk, bv], axis=-1)                        # (L,1,3D)

    vecs_d = jnp.stack(
        [stk("bo")[:, 0], stk("g1")[:, 0], stk("be1")[:, 0],
         stk("bf2")[:, 0], stk("g2")[:, 0], stk("be2")[:, 0]], axis=1)   # (L,6,D)

    return {
        "wqkv": wqkv, "bqkv": bqkv,
        "wo": stk("wo").astype(jnp.bfloat16),      # (L, D, D)
        "wf1": stk("wf1").astype(jnp.bfloat16),    # (L, D, F)
        "bf1": stk("bf1"),                         # (L, 1, F)
        "wf2": stk("wf2").astype(jnp.bfloat16),    # (L, F, D)
        "vecs_d": vecs_d,
    }


def encoder_forward(params, ids, src_mask, n_head, block_b=None):
    B, S = ids.shape
    # Token-embedding gather + sinusoidal positional add as plain-XLA ops: a
    # per-token Pallas gather is pure per-grid-step overhead (perf review).
    x = (jnp.take(params["tok_emb"], ids.astype(jnp.int32), axis=0)
         + params["pos_emb"][:S][None, :, :])
    # Precompute additive key-padding mask (0 keep / -1e4 pad) once.
    mask_add = jnp.where(src_mask == 0.0, NEG_INF, 0.0).astype(jnp.float32)
    packed = pack_layer_params(params["layers"], n_head)
    return encoder_stack(x, mask_add, packed, n_head, block_b=block_b)


if __name__ == "__main__":
    # Small, module-consistent shapes.
    enc_voc_size = 64
    max_len = 16
    d_model = 32
    ffn_hidden = 64
    n_head = 4
    n_layers = 2
    B, S = 2, 8

    key = jax.random.PRNGKey(0)
    k_ids, k_params = jax.random.split(key)

    ids = jax.random.randint(k_ids, (B, S), 0, enc_voc_size, dtype=jnp.int32)
    # src mask: 1 = attend, 0 = pad (pad token id == 0), shape (B, 1, S)
    src_mask = (ids != 0).astype(jnp.float32).reshape(B, 1, S)

    params = init_encoder_params(k_params, enc_voc_size, max_len,
                                 d_model, ffn_hidden, n_layers)

    fwd = jax.jit(functools.partial(encoder_forward, n_head=n_head))
    out = fwd(params, ids, src_mask)
    out = jax.block_until_ready(out)

    assert out.shape == (B, S, d_model)
    assert bool(jnp.all(jnp.isfinite(out)))
    print("KERNEL_OK")
</pallas_src>

<mosaic_0001>
module attributes {stable_mosaic.version = 11 : i64} {
  func.func @_encoder_stack_kernel(%arg0: i32, %arg1: i32, %arg2: memref<1x8x32xf32, #tpu.memory_space<vmem>>, %arg3: memref<1x1x8xf32, #tpu.memory_space<vmem>>, %arg4: memref<1x32x96xbf16, #tpu.memory_space<vmem>>, %arg5: memref<1x32x32xbf16, #tpu.memory_space<vmem>>, %arg6: memref<1x32x64xbf16, #tpu.memory_space<vmem>>, %arg7: memref<1x64x32xbf16, #tpu.memory_space<vmem>>, %arg8: memref<1x1x96xf32, #tpu.memory_space<vmem>>, %arg9: memref<1x1x64xf32, #tpu.memory_space<vmem>>, %arg10: memref<1x6x32xf32, #tpu.memory_space<vmem>>, %arg11: memref<1x8x32xf32, #tpu.memory_space<vmem>>, %arg12: memref<8x32xf32, #tpu.memory_space<vmem>>) attributes {dimension_semantics = [#tpu.dimension_semantics<parallel>, #tpu.dimension_semantics<arbitrary>], iteration_bounds = array<i64: 2, 2>, scalar_prefetch = 0 : i64, scratch_operands = 1 : i64, tpu.core_type = #tpu.core_type<tc>, window_params = [{transform_indices = @transform_0, window_bounds = array<i64: 1, 8, 32>}, {transform_indices = @transform_1, window_bounds = array<i64: 1, 1, 8>}, {transform_indices = @transform_2, window_bounds = array<i64: 1, 32, 96>}, {transform_indices = @transform_3, window_bounds = array<i64: 1, 32, 32>}, {transform_indices = @transform_4, window_bounds = array<i64: 1, 32, 64>}, {transform_indices = @transform_5, window_bounds = array<i64: 1, 64, 32>}, {transform_indices = @transform_6, window_bounds = array<i64: 1, 1, 96>}, {transform_indices = @transform_7, window_bounds = array<i64: 1, 1, 64>}, {transform_indices = @transform_8, window_bounds = array<i64: 1, 6, 32>}, {transform_indices = @transform_9, window_bounds = array<i64: 1, 8, 32>}]} {
    %c0_i32 = arith.constant 0 : i32
    %0 = arith.cmpi eq, %arg1, %c0_i32 : i32
    %1 = arith.extui %0 : i1 to i32
    %c0_i32_0 = arith.constant 0 : i32
    %2 = arith.cmpi ne, %1, %c0_i32_0 : i32
    scf.if %2 {
      %c0_69 = arith.constant 0 : index
      %c0_70 = arith.constant 0 : index
      %c0_71 = arith.constant 0 : index
      %195 = vector.load %arg2[%c0_69, %c0_70, %c0_71] : memref<1x8x32xf32, #tpu.memory_space<vmem>>, vector<1x8x32xf32>
      %196 = vector.shape_cast %195 : vector<1x8x32xf32> to vector<8x32xf32>
      %c0_72 = arith.constant 0 : index
      %c0_73 = arith.constant 0 : index
      %197 = vector.load %arg12[%c0_72, %c0_73] : memref<8x32xf32, #tpu.memory_space<vmem>>, vector<8x32xf32>
      tpu.vector_store %arg12[%c0_72, %c0_73], %196 {strides = array<i32>} : memref<8x32xf32, #tpu.memory_space<vmem>>, vector<8x32xf32>,
    } else {
    }
    %c0 = arith.constant 0 : index
    %c0_1 = arith.constant 0 : index
    %3 = vector.load %arg12[%c0, %c0_1] : memref<8x32xf32, #tpu.memory_space<vmem>>, vector<8x32xf32>
    %4 = arith.truncf %3 : vector<8x32xf32> to vector<8x32xbf16>
    %c0_2 = arith.constant 0 : index
    %c0_3 = arith.constant 0 : index
    %c0_4 = arith.constant 0 : index
    %5 = vector.load %arg4[%c0_2, %c0_3, %c0_4] : memref<1x32x96xbf16, #tpu.memory_space<vmem>>, vector<1x32x96xbf16>
    %6 = vector.shape_cast %5 : vector<1x32x96xbf16> to vector<32x96xbf16>
    %cst = arith.constant dense<0.000000e+00> : vector<8x96xf32>
    %7 = tpu.matmul %4, %6, %cst {dimension_numbers = #tpu.dot_dimension_numbers<[1], [0], [0], [1], [0, 0, 1, 1], [], []>} : vector<8x32xbf16>, vector<32x96xbf16>, vector<8x96xf32> -> vector<8x96xf32>
    %c0_5 = arith.constant 0 : index
    %c0_6 = arith.constant 0 : index
    %c0_7 = arith.constant 0 : index
    %8 = vector.load %arg8[%c0_5, %c0_6, %c0_7] : memref<1x1x96xf32, #tpu.memory_space<vmem>>, vector<1x1x96xf32>
    %9 = vector.shape_cast %8 : vector<1x1x96xf32> to vector<1x96xf32>
    %10 = vector.broadcast %9 : vector<1x96xf32> to vector<8x96xf32>
    %11 = arith.addf %7, %10 : vector<8x96xf32>
    %c0_8 = arith.constant 0 : index
    %c0_9 = arith.constant 0 : index
    %c0_10 = arith.constant 0 : index
    %12 = vector.load %arg3[%c0_8, %c0_9, %c0_10] : memref<1x1x8xf32, #tpu.memory_space<vmem>>, vector<1x1x8xf32>
    %13 = vector.extract_strided_slice %11 {offsets = [0, 0], sizes = [8, 8], strides = [1, 1]} : vector<8x96xf32> to vector<8x8xf32>
    %14 = vector.extract_strided_slice %11 {offsets = [0, 32], sizes = [8, 8], strides = [1, 1]} : vector<8x96xf32> to vector<8x8xf32>
    %15 = vector.extract_strided_slice %11 {offsets = [0, 64], sizes = [8, 8], strides = [1, 1]} : vector<8x96xf32> to vector<8x8xf32>
    %16 = vector.shape_cast %13 : vector<8x8xf32> to vector<1x8x8xf32>
    %17 = arith.truncf %16 : vector<1x8x8xf32> to vector<1x8x8xbf16>
    %18 = vector.shape_cast %14 : vector<8x8xf32> to vector<1x8x8xf32>
    %19 = arith.truncf %18 : vector<1x8x8xf32> to vector<1x8x8xbf16>
    %20 = vector.shape_cast %15 : vector<8x8xf32> to vector<1x8x8xf32>
    %21 = arith.truncf %20 : vector<1x8x8xf32> to vector<1x8x8xbf16>
    "tpu.trace_start"() <{level = 10 : i32, message = "bqc,bkc->bqk"}> : () -> ()
    %cst_11 = arith.constant dense<0.000000e+00> : vector<1x8x8xf32>
    %22 = tpu.matmul %17, %19, %cst_11 {dimension_numbers = #tpu.dot_dimension_numbers<[2], [2], [1], [1], [0, 0, 0, 1, 1, 1], [0], [0]>} : vector<1x8x8xbf16>, vector<1x8x8xbf16>, vector<1x8x8xf32> -> vector<1x8x8xf32>
    "tpu.trace_stop"() : () -> ()
    %23 = vector.broadcast %12 : vector<1x1x8xf32> to vector<1x8x8xf32>
    %24 = arith.addf %22, %23 : vector<1x8x8xf32>
    %cst_12 = arith.constant dense<0xFF800000> : vector<1x8xf32>
    %25 = vector.multi_reduction <maximumf>, %24, %cst_12 [2] : vector<1x8x8xf32> to vector<1x8xf32>
    %26 = vector.shape_cast %25 : vector<1x8xf32> to vector<1x8x1xf32>
    %27 = vector.broadcast %26 : vector<1x8x1xf32> to vector<1x8x8xf32>
    %28 = arith.subf %24, %27 : vector<1x8x8xf32>
    %29 = math.exp %28 : vector<1x8x8xf32>
    %cst_13 = arith.constant dense<0.000000e+00> : vector<1x8xf32>
    %30 = vector.multi_reduction <add>, %29, %cst_13 [2] : vector<1x8x8xf32> to vector<1x8xf32>
    %31 = vector.shape_cast %30 : vector<1x8xf32> to vector<1x8x1xf32>
    %32 = tpu.reciprocal %31 {approx = true} : vector<1x8x1xf32> -> vector<1x8x1xf32>
    %33 = vector.broadcast %32 : vector<1x8x1xf32> to vector<1x8x8xf32>
    %34 = arith.mulf %29, %33 : vector<1x8x8xf32>
    %35 = arith.truncf %34 : vector<1x8x8xf32> to vector<1x8x8xbf16>
    "tpu.trace_start"() <{level = 10 : i32, message = "bqk,bkc->bqc"}> : () -> ()
    %cst_14 = arith.constant dense<0.000000e+00> : vector<1x8x8xf32>
    %36 = tpu.matmul %35, %21, %cst_14 {dimension_numbers = #tpu.dot_dimension_numbers<[2], [1], [1], [2], [0, 0, 0, 1, 1, 2], [0], [0]>} : vector<1x8x8xbf16>, vector<1x8x8xbf16>, vector<1x8x8xf32> -> vector<1x8x8xf32>
    "tpu.trace_stop"() : () -> ()
    %37 = vector.extract_strided_slice %11 {offsets = [0, 8], sizes = [8, 8], strides = [1, 1]} : vector<8x96xf32> to vector<8x8xf32>
    %38 = vector.extract_strided_slice %11 {offsets = [0, 40], sizes = [8, 8], strides = [1, 1]} : vector<8x96xf32> to vector<8x8xf32>
    %39 = vector.extract_strided_slice %11 {offsets = [0, 72], sizes = [8, 8], strides = [1, 1]} : vector<8x96xf32> to vector<8x8xf32>
    %40 = vector.shape_cast %37 : vector<8x8xf32> to vector<1x8x8xf32>
    %41 = arith.truncf %40 : vector<1x8x8xf32> to vector<1x8x8xbf16>
    %42 = vector.shape_cast %38 : vector<8x8xf32> to vector<1x8x8xf32>
    %43 = arith.truncf %42 : vector<1x8x8xf32> to vector<1x8x8xbf16>
    %44 = vector.shape_cast %39 : vector<8x8xf32> to vector<1x8x8xf32>
    %45 = arith.truncf %44 : vector<1x8x8xf32> to vector<1x8x8xbf16>
    "tpu.trace_start"() <{level = 10 : i32, message = "bqc,bkc->bqk"}> : () -> ()
    %cst_15 = arith.constant dense<0.000000e+00> : vector<1x8x8xf32>
    %46 = tpu.matmul %41, %43, %cst_15 {dimension_numbers = #tpu.dot_dimension_numbers<[2], [2], [1], [1], [0, 0, 0, 1, 1, 1], [0], [0]>} : vector<1x8x8xbf16>, vector<1x8x8xbf16>, vector<1x8x8xf32> -> vector<1x8x8xf32>
    "tpu.trace_stop"() : () -> ()
    %47 = vector.broadcast %12 : vector<1x1x8xf32> to vector<1x8x8xf32>
    %48 = arith.addf %46, %47 : vector<1x8x8xf32>
    %cst_16 = arith.constant dense<0xFF800000> : vector<1x8xf32>
    %49 = vector.multi_reduction <maximumf>, %48, %cst_16 [2] : vector<1x8x8xf32> to vector<1x8xf32>
    %50 = vector.shape_cast %49 : vector<1x8xf32> to vector<1x8x1xf32>
    %51 = vector.broadcast %50 : vector<1x8x1xf32> to vector<1x8x8xf32>
    %52 = arith.subf %48, %51 : vector<1x8x8xf32>
    %53 = math.exp %52 : vector<1x8x8xf32>
    %cst_17 = arith.constant dense<0.000000e+00> : vector<1x8xf32>
    %54 = vector.multi_reduction <add>, %53, %cst_17 [2] : vector<1x8x8xf32> to vector<1x8xf32>
    %55 = vector.shape_cast %54 : vector<1x8xf32> to vector<1x8x1xf32>
    %56 = tpu.reciprocal %55 {approx = true} : vector<1x8x1xf32> -> vector<1x8x1xf32>
    %57 = vector.broadcast %56 : vector<1x8x1xf32> to vector<1x8x8xf32>
    %58 = arith.mulf %53, %57 : vector<1x8x8xf32>
    %59 = arith.truncf %58 : vector<1x8x8xf32> to vector<1x8x8xbf16>
    "tpu.trace_start"() <{level = 10 : i32, message = "bqk,bkc->bqc"}> : () -> ()
    %cst_18 = arith.constant dense<0.000000e+00> : vector<1x8x8xf32>
    %60 = tpu.matmul %59, %45, %cst_18 {dimension_numbers = #tpu.dot_dimension_numbers<[2], [1], [1], [2], [0, 0, 0, 1, 1, 2], [0], [0]>} : vector<1x8x8xbf16>, vector<1x8x8xbf16>, vector<1x8x8xf32> -> vector<1x8x8xf32>
    "tpu.trace_stop"() : () -> ()
    %61 = vector.extract_strided_slice %11 {offsets = [0, 16], sizes = [8, 8], strides = [1, 1]} : vector<8x96xf32> to vector<8x8xf32>
    %62 = vector.extract_strided_slice %11 {offsets = [0, 48], sizes = [8, 8], strides = [1, 1]} : vector<8x96xf32> to vector<8x8xf32>
    %63 = vector.extract_strided_slice %11 {offsets = [0, 80], sizes = [8, 8], strides = [1, 1]} : vector<8x96xf32> to vector<8x8xf32>
    %64 = vector.shape_cast %61 : vector<8x8xf32> to vector<1x8x8xf32>
    %65 = arith.truncf %64 : vector<1x8x8xf32> to vector<1x8x8xbf16>
    %66 = vector.shape_cast %62 : vector<8x8xf32> to vector<1x8x8xf32>
    %67 = arith.truncf %66 : vector<1x8x8xf32> to vector<1x8x8xbf16>
    %68 = vector.shape_cast %63 : vector<8x8xf32> to vector<1x8x8xf32>
    %69 = arith.truncf %68 : vector<1x8x8xf32> to vector<1x8x8xbf16>
    "tpu.trace_start"() <{level = 10 : i32, message = "bqc,bkc->bqk"}> : () -> ()
    %cst_19 = arith.constant dense<0.000000e+00> : vector<1x8x8xf32>
    %70 = tpu.matmul %65, %67, %cst_19 {dimension_numbers = #tpu.dot_dimension_numbers<[2], [2], [1], [1], [0, 0, 0, 1, 1, 1], [0], [0]>} : vector<1x8x8xbf16>, vector<1x8x8xbf16>, vector<1x8x8xf32> -> vector<1x8x8xf32>
    "tpu.trace_stop"() : () -> ()
    %71 = vector.broadcast %12 : vector<1x1x8xf32> to vector<1x8x8xf32>
    %72 = arith.addf %70, %71 : vector<1x8x8xf32>
    %cst_20 = arith.constant dense<0xFF800000> : vector<1x8xf32>
    %73 = vector.multi_reduction <maximumf>, %72, %cst_20 [2] : vector<1x8x8xf32> to vector<1x8xf32>
    %74 = vector.shape_cast %73 : vector<1x8xf32> to vector<1x8x1xf32>
    %75 = vector.broadcast %74 : vector<1x8x1xf32> to vector<1x8x8xf32>
    %76 = arith.subf %72, %75 : vector<1x8x8xf32>
    %77 = math.exp %76 : vector<1x8x8xf32>
    %cst_21 = arith.constant dense<0.000000e+00> : vector<1x8xf32>
    %78 = vector.multi_reduction <add>, %77, %cst_21 [2] : vector<1x8x8xf32> to vector<1x8xf32>
    %79 = vector.shape_cast %78 : vector<1x8xf32> to vector<1x8x1xf32>
    %80 = tpu.reciprocal %79 {approx = true} : vector<1x8x1xf32> -> vector<1x8x1xf32>
    %81 = vector.broadcast %80 : vector<1x8x1xf32> to vector<1x8x8xf32>
    %82 = arith.mulf %77, %81 : vector<1x8x8xf32>
    %83 = arith.truncf %82 : vector<1x8x8xf32> to vector<1x8x8xbf16>
    "tpu.trace_start"() <{level = 10 : i32, message = "bqk,bkc->bqc"}> : () -> ()
    %cst_22 = arith.constant dense<0.000000e+00> : vector<1x8x8xf32>
    %84 = tpu.matmul %83, %69, %cst_22 {dimension_numbers = #tpu.dot_dimension_numbers<[2], [1], [1], [2], [0, 0, 0, 1, 1, 2], [0], [0]>} : vector<1x8x8xbf16>, vector<1x8x8xbf16>, vector<1x8x8xf32> -> vector<1x8x8xf32>
    "tpu.trace_stop"() : () -> ()
    %85 = vector.extract_strided_slice %11 {offsets = [0, 24], sizes = [8, 8], strides = [1, 1]} : vector<8x96xf32> to vector<8x8xf32>
    %86 = vector.extract_strided_slice %11 {offsets = [0, 56], sizes = [8, 8], strides = [1, 1]} : vector<8x96xf32> to vector<8x8xf32>
    %87 = vector.extract_strided_slice %11 {offsets = [0, 88], sizes = [8, 8], strides = [1, 1]} : vector<8x96xf32> to vector<8x8xf32>
    %88 = vector.shape_cast %85 : vector<8x8xf32> to vector<1x8x8xf32>
    %89 = arith.truncf %88 : vector<1x8x8xf32> to vector<1x8x8xbf16>
    %90 = vector.shape_cast %86 : vector<8x8xf32> to vector<1x8x8xf32>
    %91 = arith.truncf %90 : vector<1x8x8xf32> to vector<1x8x8xbf16>
    %92 = vector.shape_cast %87 : vector<8x8xf32> to vector<1x8x8xf32>
    %93 = arith.truncf %92 : vector<1x8x8xf32> to vector<1x8x8xbf16>
    "tpu.trace_start"() <{level = 10 : i32, message = "bqc,bkc->bqk"}> : () -> ()
    %cst_23 = arith.constant dense<0.000000e+00> : vector<1x8x8xf32>
    %94 = tpu.matmul %89, %91, %cst_23 {dimension_numbers = #tpu.dot_dimension_numbers<[2], [2], [1], [1], [0, 0, 0, 1, 1, 1], [0], [0]>} : vector<1x8x8xbf16>, vector<1x8x8xbf16>, vector<1x8x8xf32> -> vector<1x8x8xf32>
    "tpu.trace_stop"() : () -> ()
    %95 = vector.broadcast %12 : vector<1x1x8xf32> to vector<1x8x8xf32>
    %96 = arith.addf %94, %95 : vector<1x8x8xf32>
    %cst_24 = arith.constant dense<0xFF800000> : vector<1x8xf32>
    %97 = vector.multi_reduction <maximumf>, %96, %cst_24 [2] : vector<1x8x8xf32> to vector<1x8xf32>
    %98 = vector.shape_cast %97 : vector<1x8xf32> to vector<1x8x1xf32>
    %99 = vector.broadcast %98 : vector<1x8x1xf32> to vector<1x8x8xf32>
    %100 = arith.subf %96, %99 : vector<1x8x8xf32>
    %101 = math.exp %100 : vector<1x8x8xf32>
    %cst_25 = arith.constant dense<0.000000e+00> : vector<1x8xf32>
    %102 = vector.multi_reduction <add>, %101, %cst_25 [2] : vector<1x8x8xf32> to vector<1x8xf32>
    %103 = vector.shape_cast %102 : vector<1x8xf32> to vector<1x8x1xf32>
    %104 = tpu.reciprocal %103 {approx = true} : vector<1x8x1xf32> -> vector<1x8x1xf32>
    %105 = vector.broadcast %104 : vector<1x8x1xf32> to vector<1x8x8xf32>
    %106 = arith.mulf %101, %105 : vector<1x8x8xf32>
    %107 = arith.truncf %106 : vector<1x8x8xf32> to vector<1x8x8xbf16>
    "tpu.trace_start"() <{level = 10 : i32, message = "bqk,bkc->bqc"}> : () -> ()
    %cst_26 = arith.constant dense<0.000000e+00> : vector<1x8x8xf32>
    %108 = tpu.matmul %107, %93, %cst_26 {dimension_numbers = #tpu.dot_dimension_numbers<[2], [1], [1], [2], [0, 0, 0, 1, 1, 2], [0], [0]>} : vector<1x8x8xbf16>, vector<1x8x8xbf16>, vector<1x8x8xf32> -> vector<1x8x8xf32>
    "tpu.trace_stop"() : () -> ()
    %109 = tpu.concatenate %36, %60, %84, %108 in 2 : vector<1x8x8xf32>, vector<1x8x8xf32>, vector<1x8x8xf32>, vector<1x8x8xf32> -> vector<1x8x32xf32>
    %110 = vector.shape_cast %109 : vector<1x8x32xf32> to vector<8x32xf32>
    %111 = arith.truncf %110 : vector<8x32xf32> to vector<8x32xbf16>
    %c0_27 = arith.constant 0 : index
    %c0_28 = arith.constant 0 : index
    %c0_29 = arith.constant 0 : index
    %112 = vector.load %arg5[%c0_27, %c0_28, %c0_29] : memref<1x32x32xbf16, #tpu.memory_space<vmem>>, vector<1x32x32xbf16>
    %113 = vector.shape_cast %112 : vector<1x32x32xbf16> to vector<32x32xbf16>
    %cst_30 = arith.constant dense<0.000000e+00> : vector<8x32xf32>
    %114 = tpu.matmul %111, %113, %cst_30 {dimension_numbers = #tpu.dot_dimension_numbers<[1], [0], [0], [1], [0, 0, 1, 1], [], []>} : vector<8x32xbf16>, vector<32x32xbf16>, vector<8x32xf32> -> vector<8x32xf32>
    %c0_31 = arith.constant 0 : index
    %c0_32 = arith.constant 0 : index
    %c0_33 = arith.constant 0 : index
    %115 = vector.load %arg10[%c0_31, %c0_32, %c0_33] : memref<1x6x32xf32, #tpu.memory_space<vmem>>, vector<1x1x32xf32>
    %116 = vector.shape_cast %115 : vector<1x1x32xf32> to vector<1x32xf32>
    %117 = vector.broadcast %116 : vector<1x32xf32> to vector<8x32xf32>
    %118 = arith.addf %114, %117 : vector<8x32xf32>
    %119 = arith.addf %3, %118 : vector<8x32xf32>
    %c0_34 = arith.constant 0 : index
    %c1 = arith.constant 1 : index
    %c0_35 = arith.constant 0 : index
    %120 = vector.load %arg10[%c0_34, %c1, %c0_35] : memref<1x6x32xf32, #tpu.memory_space<vmem>>, vector<1x1x32xf32>
    %121 = vector.shape_cast %120 : vector<1x1x32xf32> to vector<1x32xf32>
    %c0_36 = arith.constant 0 : index
    %c2 = arith.constant 2 : index
    %c0_37 = arith.constant 0 : index
    %122 = vector.load %arg10[%c0_36, %c2, %c0_37] : memref<1x6x32xf32, #tpu.memory_space<vmem>>, vector<1x1x32xf32>
    %123 = vector.shape_cast %122 : vector<1x1x32xf32> to vector<1x32xf32>
    %cst_38 = arith.constant dense<0.000000e+00> : vector<8xf32>
    %124 = vector.multi_reduction <add>, %119, %cst_38 [1] : vector<8x32xf32> to vector<8xf32>
    %125 = vector.shape_cast %124 : vector<8xf32> to vector<8x1xf32>
    %cst_39 = arith.constant 3.200000e+01 : f32
    %126 = vector.broadcast %cst_39 : f32 to vector<8x1xf32>
    %127 = arith.divf %125, %126 : vector<8x1xf32>
    %128 = vector.broadcast %127 : vector<8x1xf32> to vector<8x32xf32>
    %129 = arith.subf %119, %128 : vector<8x32xf32>
    %130 = arith.mulf %129, %129 : vector<8x32xf32>
    %cst_40 = arith.constant dense<0.000000e+00> : vector<8xf32>
    %131 = vector.multi_reduction <add>, %130, %cst_40 [1] : vector<8x32xf32> to vector<8xf32>
    %132 = vector.shape_cast %131 : vector<8xf32> to vector<8x1xf32>
    %cst_41 = arith.constant 3.200000e+01 : f32
    %133 = vector.broadcast %cst_41 : f32 to vector<8x1xf32>
    %134 = arith.divf %132, %133 : vector<8x1xf32>
    %135 = vector.broadcast %127 : vector<8x1xf32> to vector<8x32xf32>
    %136 = arith.subf %119, %135 : vector<8x32xf32>
    %137 = vector.broadcast %121 : vector<1x32xf32> to vector<8x32xf32>
    %138 = arith.mulf %137, %136 : vector<8x32xf32>
    %cst_42 = arith.constant 9.99999996E-13 : f32
    %139 = vector.broadcast %cst_42 : f32 to vector<8x1xf32>
    %140 = arith.addf %134, %139 : vector<8x1xf32>
    %141 = math.rsqrt %140 : vector<8x1xf32>
    %142 = vector.broadcast %141 : vector<8x1xf32> to vector<8x32xf32>
    %143 = arith.mulf %138, %142 : vector<8x32xf32>
    %144 = vector.broadcast %123 : vector<1x32xf32> to vector<8x32xf32>
    %145 = arith.addf %143, %144 : vector<8x32xf32>
    %146 = arith.truncf %145 : vector<8x32xf32> to vector<8x32xbf16>
    %c0_43 = arith.constant 0 : index
    %c0_44 = arith.constant 0 : index
    %c0_45 = arith.constant 0 : index
    %147 = vector.load %arg6[%c0_43, %c0_44, %c0_45] : memref<1x32x64xbf16, #tpu.memory_space<vmem>>, vector<1x32x64xbf16>
    %148 = vector.shape_cast %147 : vector<1x32x64xbf16> to vector<32x64xbf16>
    %cst_46 = arith.constant dense<0.000000e+00> : vector<8x64xf32>
    %149 = tpu.matmul %146, %148, %cst_46 {dimension_numbers = #tpu.dot_dimension_numbers<[1], [0], [0], [1], [0, 0, 1, 1], [], []>} : vector<8x32xbf16>, vector<32x64xbf16>, vector<8x64xf32> -> vector<8x64xf32>
    %c0_47 = arith.constant 0 : index
    %c0_48 = arith.constant 0 : index
    %c0_49 = arith.constant 0 : index
    %150 = vector.load %arg9[%c0_47, %c0_48, %c0_49] : memref<1x1x64xf32, #tpu.memory_space<vmem>>, vector<1x1x64xf32>
    %151 = vector.shape_cast %150 : vector<1x1x64xf32> to vector<1x64xf32>
    %152 = vector.broadcast %151 : vector<1x64xf32> to vector<8x64xf32>
    %153 = arith.addf %149, %152 : vector<8x64xf32>
    %cst_50 = arith.constant 0.000000e+00 : f32
    %154 = vector.broadcast %cst_50 : f32 to vector<8x64xf32>
    %155 = arith.maximumf %153, %154 : vector<8x64xf32>
    %156 = arith.truncf %155 : vector<8x64xf32> to vector<8x64xbf16>
    %c0_51 = arith.constant 0 : index
    %c0_52 = arith.constant 0 : index
    %c0_53 = arith.constant 0 : index
    %157 = vector.load %arg7[%c0_51, %c0_52, %c0_53] : memref<1x64x32xbf16, #tpu.memory_space<vmem>>, vector<1x64x32xbf16>
    %158 = vector.shape_cast %157 : vector<1x64x32xbf16> to vector<64x32xbf16>
    %cst_54 = arith.constant dense<0.000000e+00> : vector<8x32xf32>
    %159 = tpu.matmul %156, %158, %cst_54 {dimension_numbers = #tpu.dot_dimension_numbers<[1], [0], [0], [1], [0, 0, 1, 1], [], []>} : vector<8x64xbf16>, vector<64x32xbf16>, vector<8x32xf32> -> vector<8x32xf32>
    %c0_55 = arith.constant 0 : index
    %c3 = arith.constant 3 : index
    %c0_56 = arith.constant 0 : index
    %160 = vector.load %arg10[%c0_55, %c3, %c0_56] : memref<1x6x32xf32, #tpu.memory_space<vmem>>, vector<1x1x32xf32>
    %161 = vector.shape_cast %160 : vector<1x1x32xf32> to vector<1x32xf32>
    %162 = vector.broadcast %161 : vector<1x32xf32> to vector<8x32xf32>
    %163 = arith.addf %159, %162 : vector<8x32xf32>
    %164 = arith.addf %145, %163 : vector<8x32xf32>
    %c0_57 = arith.constant 0 : index
    %c4 = arith.constant 4 : index
    %c0_58 = arith.constant 0 : index
    %165 = vector.load %arg10[%c0_57, %c4, %c0_58] : memref<1x6x32xf32, #tpu.memory_space<vmem>>, vector<1x1x32xf32>
    %166 = vector.shape_cast %165 : vector<1x1x32xf32> to vector<1x32xf32>
    %c0_59 = arith.constant 0 : index
    %c5 = arith.constant 5 : index
    %c0_60 = arith.constant 0 : index
    %167 = vector.load %arg10[%c0_59, %c5, %c0_60] : memref<1x6x32xf32, #tpu.memory_space<vmem>>, vector<1x1x32xf32>
    %168 = vector.shape_cast %167 : vector<1x1x32xf32> to vector<1x32xf32>
    %cst_61 = arith.constant dense<0.000000e+00> : vector<8xf32>
    %169 = vector.multi_reduction <add>, %164, %cst_61 [1] : vector<8x32xf32> to vector<8xf32>
    %170 = vector.shape_cast %169 : vector<8xf32> to vector<8x1xf32>
    %cst_62 = arith.constant 3.200000e+01 : f32
    %171 = vector.broadcast %cst_62 : f32 to vector<8x1xf32>
    %172 = arith.divf %170, %171 : vector<8x1xf32>
    %173 = vector.broadcast %172 : vector<8x1xf32> to vector<8x32xf32>
    %174 = arith.subf %164, %173 : vector<8x32xf32>
    %175 = arith.mulf %174, %174 : vector<8x32xf32>
    %cst_63 = arith.constant dense<0.000000e+00> : vector<8xf32>
    %176 = vector.multi_reduction <add>, %175, %cst_63 [1] : vector<8x32xf32> to vector<8xf32>
    %177 = vector.shape_cast %176 : vector<8xf32> to vector<8x1xf32>
    %cst_64 = arith.constant 3.200000e+01 : f32
    %178 = vector.broadcast %cst_64 : f32 to vector<8x1xf32>
    %179 = arith.divf %177, %178 : vector<8x1xf32>
    %180 = vector.broadcast %172 : vector<8x1xf32> to vector<8x32xf32>
    %181 = arith.subf %164, %180 : vector<8x32xf32>
    %182 = vector.broadcast %166 : vector<1x32xf32> to vector<8x32xf32>
    %183 = arith.mulf %182, %181 : vector<8x32xf32>
    %cst_65 = arith.constant 9.99999996E-13 : f32
    %184 = vector.broadcast %cst_65 : f32 to vector<8x1xf32>
    %185 = arith.addf %179, %184 : vector<8x1xf32>
    %186 = math.rsqrt %185 : vector<8x1xf32>
    %187 = vector.broadcast %186 : vector<8x1xf32> to vector<8x32xf32>
    %188 = arith.mulf %183, %187 : vector<8x32xf32>
    %189 = vector.broadcast %168 : vector<1x32xf32> to vector<8x32xf32>
    %190 = arith.addf %188, %189 : vector<8x32xf32>
    %c0_66 = arith.constant 0 : index
    %c0_67 = arith.constant 0 : index
    %191 = vector.load %arg12[%c0_66, %c0_67] : memref<8x32xf32, #tpu.memory_space<vmem>>, vector<8x32xf32>
    tpu.vector_store %arg12[%c0_66, %c0_67], %190 {strides = array<i32>} : memref<8x32xf32, #tpu.memory_space<vmem>>, vector<8x32xf32>,
    %c1_i32 = arith.constant 1 : i32
    %192 = arith.cmpi eq, %arg1, %c1_i32 : i32
    %193 = arith.extui %192 : i1 to i32
    %c0_i32_68 = arith.constant 0 : i32
    %194 = arith.cmpi ne, %193, %c0_i32_68 : i32
    scf.if %194 {
      %195 = vector.shape_cast %190 : vector<8x32xf32> to vector<1x8x32xf32>
      %c0_69 = arith.constant 0 : index
      %c0_70 = arith.constant 0 : index
      %c0_71 = arith.constant 0 : index
      %196 = vector.load %arg11[%c0_69, %c0_70, %c0_71] : memref<1x8x32xf32, #tpu.memory_space<vmem>>, vector<1x8x32xf32>
      tpu.vector_store %arg11[%c0_69, %c0_70, %c0_71], %195 {strides = array<i32>} : memref<1x8x32xf32, #tpu.memory_space<vmem>>, vector<1x8x32xf32>,
    } else {
    }
    return
  }
  func.func @transform_0(%arg0: i32, %arg1: i32) -> (i32, i32, i32) {
    %c0_i32 = arith.constant 0 : i32
    %c0_i32_0 = arith.constant 0 : i32
    %c0_i32_1 = arith.constant 0 : i32
    return %arg0, %c0_i32, %c0_i32_0 : i32, i32, i32
  }
  func.func @transform_1(%arg0: i32, %arg1: i32) -> (i32, i32, i32) {
    %c0_i32 = arith.constant 0 : i32
    %c0_i32_0 = arith.constant 0 : i32
    %c0_i32_1 = arith.constant 0 : i32
    return %arg0, %c0_i32, %c0_i32_0 : i32, i32, i32
  }
  func.func @transform_2(%arg0: i32, %arg1: i32) -> (i32, i32, i32) {
    %c0_i32 = arith.constant 0 : i32
    %c0_i32_0 = arith.constant 0 : i32
    %c0_i32_1 = arith.constant 0 : i32
    return %arg1, %c0_i32, %c0_i32_0 : i32, i32, i32
  }
  func.func @transform_3(%arg0: i32, %arg1: i32) -> (i32, i32, i32) {
    %c0_i32 = arith.constant 0 : i32
    %c0_i32_0 = arith.constant 0 : i32
    %c0_i32_1 = arith.constant 0 : i32
    return %arg1, %c0_i32, %c0_i32_0 : i32, i32, i32
  }
  func.func @transform_4(%arg0: i32, %arg1: i32) -> (i32, i32, i32) {
    %c0_i32 = arith.constant 0 : i32
    %c0_i32_0 = arith.constant 0 : i32
    %c0_i32_1 = arith.constant 0 : i32
    return %arg1, %c0_i32, %c0_i32_0 : i32, i32, i32
  }
  func.func @transform_5(%arg0: i32, %arg1: i32) -> (i32, i32, i32) {
    %c0_i32 = arith.constant 0 : i32
    %c0_i32_0 = arith.constant 0 : i32
    %c0_i32_1 = arith.constant 0 : i32
    return %arg1, %c0_i32, %c0_i32_0 : i32, i32, i32
  }
  func.func @transform_6(%arg0: i32, %arg1: i32) -> (i32, i32, i32) {
    %c0_i32 = arith.constant 0 : i32
    %c0_i32_0 = arith.constant 0 : i32
    %c0_i32_1 = arith.constant 0 : i32
    return %arg1, %c0_i32, %c0_i32_0 : i32, i32, i32
  }
  func.func @transform_7(%arg0: i32, %arg1: i32) -> (i32, i32, i32) {
    %c0_i32 = arith.constant 0 : i32
    %c0_i32_0 = arith.constant 0 : i32
    %c0_i32_1 = arith.constant 0 : i32
    return %arg1, %c0_i32, %c0_i32_0 : i32, i32, i32
  }
  func.func @transform_8(%arg0: i32, %arg1: i32) -> (i32, i32, i32) {
    %c0_i32 = arith.constant 0 : i32
    %c0_i32_0 = arith.constant 0 : i32
    %c0_i32_1 = arith.constant 0 : i32
    return %arg1, %c0_i32, %c0_i32_0 : i32, i32, i32
  }
  func.func @transform_9(%arg0: i32, %arg1: i32) -> (i32, i32, i32) {
    %c0_i32 = arith.constant 0 : i32
    %c0_i32_0 = arith.constant 0 : i32
    %c0_i32_1 = arith.constant 0 : i32
    return %arg0, %c0_i32, %c0_i32_0 : i32, i32, i32
  }
}

</mosaic_0001>

<llo_original>
// kernel: encoder_forward.1
$region0: #{encoder_forward.1}
  #allocation0 [shape = 'u32[]', space=smem, size = 0x4, offset = 0x4, fixed_abs, tag = 'smem constant byte address 0x4 - core index']
  #allocation1 [shape = 'u32[72,128]{1,0:T(1,128)}', space=vmem, size = 0x9000, scoped, tag = 'internal scratch']
  #allocation2 [shape = 'f32[8,32]{1,0:T(8,128)}', space=vmem, size = 0x1000, scoped, tag = 'scratch operand']
  %s0 = inlined_call_operand.vmem [shape: f32[2,8,32], index: 0, kind: input, shape index: {}]
  %s1 = inlined_call_operand.vmem [shape: f32[2,1,8], index: 1, kind: input, shape index: {}]
  %s2 = inlined_call_operand.vmem [shape: bf16[2,32,96], index: 2, kind: input, shape index: {}]
  %s3 = inlined_call_operand.vmem [shape: bf16[2,32,32], index: 3, kind: input, shape index: {}]
  %s4 = inlined_call_operand.vmem [shape: bf16[2,32,64], index: 4, kind: input, shape index: {}]
  %s5 = inlined_call_operand.vmem [shape: bf16[2,64,32], index: 5, kind: input, shape index: {}]
  %s6 = inlined_call_operand.vmem [shape: f32[2,1,96], index: 6, kind: input, shape index: {}]
  %s7 = inlined_call_operand.vmem [shape: f32[2,1,64], index: 7, kind: input, shape index: {}]
  %s8 = inlined_call_operand.vmem [shape: f32[2,6,32], index: 8, kind: input, shape index: {}]
  %s9 = inlined_call_operand.hbm [shape: f32[2,8,32], index: 9, kind: output, shape index: {}]
  %s10 = sld [smem:[#allocation0]]
  $region77: #{encoder_forward.1} parent=0
    _
  %s12 = ssub.s32 1, %s10
  %s13 = scalar_select 0, %s12, %s10
  $region1: #{encoder_forward.1} parent=0
    #allocation3 [shape = 'u8[8192]{0}', space=vmem, size = 0x2000, scoped, tag = 'output window, operand 0']
    #allocation4 [shape = 's32[2]{0}', space=sflag, size = 0x8, scoped, tag = 'scoped memory for encoder_forward.1']
    %14 = vsyncpa [#allocation4], 0
    %s15 = scalar_lea.sflag [#allocation4], 1
    %16 = vsyncpa %s15, 0
    loop: start=0, step=1, limit=6
    $region2: #{encoder_forward.1} parent=1 // loop_pre_header
      _
    $region3: #{encoder_forward.1} parent=1 // loop_header
      %s18 = sphi 0, %s22
      %p19 = scmp.ge.s32.totalorder %s18, 6
      %s25 = sphi 0, %s37
      %s26 = sphi 0, %s33
      %s27 = sphi 0, %s25
      %s28 = sphi 0, %s26
      %s29 = sphi 0, %s27
      %s30 = sphi 0, %s28
      %s40 = sphi 0, %s42
      %s43 = sphi 0, %s40
      %s44 = sphi 0, %s43
      %s60 = sphi 0, %s44
      %s66 = sphi 0, %s68
      %s69 = sphi 0, %s66
      %s70 = sphi 0, %s69
      %s86 = sphi 0, %s70
      %s92 = sphi 0, %s94
      %s95 = sphi 0, %s92
      %s96 = sphi 0, %s95
      %s112 = sphi 0, %s96
      %s118 = sphi 0, %s120
      %s121 = sphi 0, %s118
      %s122 = sphi 0, %s121
      %s138 = sphi 0, %s122
      %s144 = sphi 0, %s146
      %s147 = sphi 0, %s144
      %s148 = sphi 0, %s147
      %s164 = sphi 0, %s148
      %s170 = sphi 0, %s172
      %s173 = sphi 0, %s170
      %s174 = sphi 0, %s173
      %s190 = sphi 0, %s174
      %s196 = sphi 0, %s198
      %s199 = sphi 0, %s196
      %s200 = sphi 0, %s199
      %s216 = sphi 0, %s200
      %s222 = sphi 0, %s224
      %s225 = sphi 0, %s222
      %s226 = sphi 0, %s225
      %s242 = sphi 0, %s226
      %s248 = sphi 0, %s250
      %s251 = sphi 0, %s248
      %s252 = sphi 0, %s251
      %s268 = sphi 0, %s252
      %s274 = sphi 0, %s276
      %s277 = sphi 0, %s274
      %s278 = sphi 0, %s277
      %s294 = sphi 0, %s278
    $region4: #{encoder_forward.1} parent=1 // loop_header_branch
      %21 = sbr.rel (%p19) target = $region8
    $region5: #{encoder_forward.1} parent=1 // loop_body
      %s23 = ssub.s32 %s18, 1
      %s24 = ssub.s32 %s18, 2
      %s31 = sadd.s32 1, %s26
      %p32 = scmp.ge.s32.totalorder %s31, 2
      %s33 = scalar_select %p32, 0, %s31
      %s34 = sadd.s32 1, %s25
      %s35 = scalar_select %p32, %s34, %s25
      %p36 = scmp.ge.s32.totalorder %s35, 2
      %s37 = scalar_select %p36, 0, %s35
      %s38 = ssub.s32 %s25, %s37
      %p39 = scmp.eq.s32.totalorder %s38, 0
      %s41 = sadd.s32 %s40, 1
      %s42 = scalar_select %p39, %s40, %s41
      %p45 = pneg %p39
      %p46 = scmp.eq.s32.totalorder %s18, 3
      %p47 = por %p45, %p46
      %p48 = scmp.ne.s32.totalorder %s40, %s43
      %p49 = scmp.eq.s32.totalorder %s18, 0
      %p50 = por %p48, %p49
      %p51 = scmp.ne.s32.totalorder %s40, %s43
      %p52 = scmp.eq.s32.totalorder %s23, 3
      %p53 = por %p51, %p52
      %p54 = scmp.ne.s32.totalorder %s43, %s44
      %p55 = scmp.eq.s32.totalorder %s23, 0
      %p56 = por %p54, %p55
      %p57 = scmp.ne.s32.totalorder %s43, %s44
      %p58 = scmp.eq.s32.totalorder %s24, 3
      %p59 = por %p57, %p58
      %p61 = scmp.ne.s32.totalorder %s44, %s60
      %p62 = scmp.eq.s32.totalorder %s24, 0
      %p63 = por %p61, %p62
      %s64 = ssub.s32 %s25, %s37
      %p65 = scmp.eq.s32.totalorder %s64, 0
      %s67 = sadd.s32 %s66, 1
      %s68 = scalar_select %p65, %s66, %s67
      %p71 = pneg %p65
      %p72 = scmp.eq.s32.totalorder %s18, 3
      %p73 = por %p71, %p72
      %p74 = scmp.ne.s32.totalorder %s66, %s69
      %p75 = scmp.eq.s32.totalorder %s18, 0
      %p76 = por %p74, %p75
      %p77 = scmp.ne.s32.totalorder %s66, %s69
      %p78 = scmp.eq.s32.totalorder %s23, 3
      %p79 = por %p77, %p78
      %p80 = scmp.ne.s32.totalorder %s69, %s70
      %p81 = scmp.eq.s32.totalorder %s23, 0
      %p82 = por %p80, %p81
      %p83 = scmp.ne.s32.totalorder %s69, %s70
      %p84 = scmp.eq.s32.totalorder %s24, 3
      %p85 = por %p83, %p84
      %p87 = scmp.ne.s32.totalorder %s70, %s86
      %p88 = scmp.eq.s32.totalorder %s24, 0
      %p89 = por %p87, %p88
      %s90 = ssub.s32 %s26, %s33
      %p91 = scmp.eq.s32.totalorder %s90, 0
      %s93 = sadd.s32 %s92, 1
      %s94 = scalar_select %p91, %s92, %s93
      %p97 = pneg %p91
      %p98 = scmp.eq.s32.totalorder %s18, 3
      %p99 = por %p97, %p98
      %p100 = scmp.ne.s32.totalorder %s92, %s95
      %p101 = scmp.eq.s32.totalorder %s18, 0
      %p102 = por %p100, %p101
      %p103 = scmp.ne.s32.totalorder %s92, %s95
      %p104 = scmp.eq.s32.totalorder %s23, 3
      %p105 = por %p103, %p104
      %p106 = scmp.ne.s32.totalorder %s95, %s96
      %p107 = scmp.eq.s32.totalorder %s23, 0
      %p108 = por %p106, %p107
      %p109 = scmp.ne.s32.totalorder %s95, %s96
      %p110 = scmp.eq.s32.totalorder %s24, 3
      %p111 = por %p109, %p110
      %p113 = scmp.ne.s32.totalorder %s96, %s112
      %p114 = scmp.eq.s32.totalorder %s24, 0
      %p115 = por %p113, %p114
      %s116 = ssub.s32 %s26, %s33
      %p117 = scmp.eq.s32.totalorder %s116, 0
      %s119 = sadd.s32 %s118, 1
      %s120 = scalar_select %p117, %s118, %s119
      %p123 = pneg %p117
      %p124 = scmp.eq.s32.totalorder %s18, 3
      %p125 = por %p123, %p124
      %p126 = scmp.ne.s32.totalorder %s118, %s121
      %p127 = scmp.eq.s32.totalorder %s18, 0
      %p128 = por %p126, %p127
      %p129 = scmp.ne.s32.totalorder %s118, %s121
      %p130 = scmp.eq.s32.totalorder %s23, 3
      %p131 = por %p129, %p130
      %p132 = scmp.ne.s32.totalorder %s121, %s122
      %p133 = scmp.eq.s32.totalorder %s23, 0
      %p134 = por %p132, %p133
      %p135 = scmp.ne.s32.totalorder %s121, %s122
      %p136 = scmp.eq.s32.totalorder %s24, 3
      %p137 = por %p135, %p136
      %p139 = scmp.ne.s32.totalorder %s122, %s138
      %p140 = scmp.eq.s32.totalorder %s24, 0
      %p141 = por %p139, %p140
      %s142 = ssub.s32 %s26, %s33
      %p143 = scmp.eq.s32.totalorder %s142, 0
      %s145 = sadd.s32 %s144, 1
      %s146 = scalar_select %p143, %s144, %s145
      %p149 = pneg %p143
      %p150 = scmp.eq.s32.totalorder %s18, 3
      %p151 = por %p149, %p150
      %p152 = scmp.ne.s32.totalorder %s144, %s147
      %p153 = scmp.eq.s32.totalorder %s18, 0
      %p154 = por %p152, %p153
      %p155 = scmp.ne.s32.totalorder %s144, %s147
      %p156 = scmp.eq.s32.totalorder %s23, 3
      %p157 = por %p155, %p156
      %p158 = scmp.ne.s32.totalorder %s147, %s148
      %p159 = scmp.eq.s32.totalorder %s23, 0
      %p160 = por %p158, %p159
      %p161 = scmp.ne.s32.totalorder %s147, %s148
      %p162 = scmp.eq.s32.totalorder %s24, 3
      %p163 = por %p161, %p162
      %p165 = scmp.ne.s32.totalorder %s148, %s164
      %p166 = scmp.eq.s32.totalorder %s24, 0
      %p167 = por %p165, %p166
      %s168 = ssub.s32 %s26, %s33
      %p169 = scmp.eq.s32.totalorder %s168, 0
      %s171 = sadd.s32 %s170, 1
      %s172 = scalar_select %p169, %s170, %s171
      %p175 = pneg %p169
      %p176 = scmp.eq.s32.totalorder %s18, 3
      %p177 = por %p175, %p176
      %p178 = scmp.ne.s32.totalorder %s170, %s173
      %p179 = scmp.eq.s32.totalorder %s18, 0
      %p180 = por %p178, %p179
      %p181 = scmp.ne.s32.totalorder %s170, %s173
      %p182 = scmp.eq.s32.totalorder %s23, 3
      %p183 = por %p181, %p182
      %p184 = scmp.ne.s32.totalorder %s173, %s174
      %p185 = scmp.eq.s32.totalorder %s23, 0
      %p186 = por %p184, %p185
      %p187 = scmp.ne.s32.totalorder %s173, %s174
      %p188 = scmp.eq.s32.totalorder %s24, 3
      %p189 = por %p187, %p188
      %p191 = scmp.ne.s32.totalorder %s174, %s190
      %p192 = scmp.eq.s32.totalorder %s24, 0
      %p193 = por %p191, %p192
      %s194 = ssub.s32 %s26, %s33
      %p195 = scmp.eq.s32.totalorder %s194, 0
      %s197 = sadd.s32 %s196, 1
      %s198 = scalar_select %p195, %s196, %s197
      %p201 = pneg %p195
      %p202 = scmp.eq.s32.totalorder %s18, 3
      %p203 = por %p201, %p202
      %p204 = scmp.ne.s32.totalorder %s196, %s199
      %p205 = scmp.eq.s32.totalorder %s18, 0
      %p206 = por %p204, %p205
      %p207 = scmp.ne.s32.totalorder %s196, %s199
      %p208 = scmp.eq.s32.totalorder %s23, 3
      %p209 = por %p207, %p208
      %p210 = scmp.ne.s32.totalorder %s199, %s200
      %p211 = scmp.eq.s32.totalorder %s23, 0
      %p212 = por %p210, %p211
      %p213 = scmp.ne.s32.totalorder %s199, %s200
      %p214 = scmp.eq.s32.totalorder %s24, 3
      %p215 = por %p213, %p214
      %p217 = scmp.ne.s32.totalorder %s200, %s216
      %p218 = scmp.eq.s32.totalorder %s24, 0
      %p219 = por %p217, %p218
      %s220 = ssub.s32 %s26, %s33
      %p221 = scmp.eq.s32.totalorder %s220, 0
      %s223 = sadd.s32 %s222, 1
      %s224 = scalar_select %p221, %s222, %s223
      %p227 = pneg %p221
      %p228 = scmp.eq.s32.totalorder %s18, 3
      %p229 = por %p227, %p228
      %p230 = scmp.ne.s32.totalorder %s222, %s225
      %p231 = scmp.eq.s32.totalorder %s18, 0
      %p232 = por %p230, %p231
      %p233 = scmp.ne.s32.totalorder %s222, %s225
      %p234 = scmp.eq.s32.totalorder %s23, 3
      %p235 = por %p233, %p234
      %p236 = scmp.ne.s32.totalorder %s225, %s226
      %p237 = scmp.eq.s32.totalorder %s23, 0
      %p238 = por %p236, %p237
      %p239 = scmp.ne.s32.totalorder %s225, %s226
      %p240 = scmp.eq.s32.totalorder %s24, 3
      %p241 = por %p239, %p240
      %p243 = scmp.ne.s32.totalorder %s226, %s242
      %p244 = scmp.eq.s32.totalorder %s24, 0
      %p245 = por %p243, %p244
      %s246 = ssub.s32 %s26, %s33
      %p247 = scmp.eq.s32.totalorder %s246, 0
      %s249 = sadd.s32 %s248, 1
      %s250 = scalar_select %p247, %s248, %s249
      %p253 = pneg %p247
      %p254 = scmp.eq.s32.totalorder %s18, 3
      %p255 = por %p253, %p254
      %p256 = scmp.ne.s32.totalorder %s248, %s251
      %p257 = scmp.eq.s32.totalorder %s18, 0
      %p258 = por %p256, %p257
      %p259 = scmp.ne.s32.totalorder %s248, %s251
      %p260 = scmp.eq.s32.totalorder %s23, 3
      %p261 = por %p259, %p260
      %p262 = scmp.ne.s32.totalorder %s251, %s252
      %p263 = scmp.eq.s32.totalorder %s23, 0
      %p264 = por %p262, %p263
      %p265 = scmp.ne.s32.totalorder %s251, %s252
      %p266 = scmp.eq.s32.totalorder %s24, 3
      %p267 = por %p265, %p266
      %p269 = scmp.ne.s32.totalorder %s252, %s268
      %p270 = scmp.eq.s32.totalorder %s24, 0
      %p271 = por %p269, %p270
      %s272 = ssub.s32 %s25, %s37
      %p273 = scmp.eq.s32.totalorder %s272, 0
      %s275 = sadd.s32 %s274, 1
      %s276 = scalar_select %p273, %s274, %s275
      %p279 = pneg %p273
      %p280 = scmp.eq.s32.totalorder %s18, 3
      %p281 = por %p279, %p280
      %p282 = scmp.ne.s32.totalorder %s274, %s277
      %p283 = scmp.eq.s32.totalorder %s18, 0
      %p284 = por %p282, %p283
      %p285 = scmp.ne.s32.totalorder %s274, %s277
      %p286 = scmp.eq.s32.totalorder %s23, 3
      %p287 = por %p285, %p286
      %p288 = scmp.ne.s32.totalorder %s277, %s278
      %p289 = scmp.eq.s32.totalorder %s23, 0
      %p290 = por %p288, %p289
      %p291 = scmp.ne.s32.totalorder %s277, %s278
      %p292 = scmp.eq.s32.totalorder %s24, 3
      %p293 = por %p291, %p292
      %p295 = scmp.ne.s32.totalorder %s278, %s294
      %p296 = scmp.eq.s32.totalorder %s24, 0
      %p297 = por %p295, %p296
      %p298 = scmp.le.s32.totalorder 1, %s18
      %p299 = scmp.lt.s32.totalorder %s18, 5
      %p300 = pnand %p298, %p299
      %p301 = pneg %p300
      // Predicated region
      $region9: #{encoder_forward.1} parent=5 // pred_check
        _
      $region10: #{encoder_forward.1} parent=5 // pred_check_branch
        %303 = sbr.rel (%p300) target = $region12
      $region11: #{encoder_forward.1} parent=5 // pred_region
        %s304 = ssub.s32 %s18, 1
      $region12: #{encoder_forward.1} parent=5 // pred_fallthru
        _
      %p305 = scmp.lt.s32.totalorder %s18, 4
      // Predicated region
      $region13: #{encoder_forward.1} parent=5 // pred_check
        %p306 = pneg %p305
      $region14: #{encoder_forward.1} parent=5 // pred_check_branch
        %308 = sbr.rel (%p306) target = $region16
      $region15: #{encoder_forward.1} parent=5 // pred_region
        // Predicated region
        $region17: #{encoder_forward.1} parent=15 // pred_check
          %p309 = pneg %p50
        $region18: #{encoder_forward.1} parent=15 // pred_check_branch
          %311 = sbr.rel (%p309) target = $region20
        $region19: #{encoder_forward.1} parent=15 // pred_region
          %p312 = scmp.lt.s32.totalorder %s25, 1
          %s313 = scalar_select %p312, %s25, 1
          %s314 = smul.addr %s313, 8
          %s315 = scalar_lea.vmem %s0, %s314
        $region20: #{encoder_forward.1} parent=15 // pred_fallthru
          _
        // Predicated region
        $region21: #{encoder_forward.1} parent=15 // pred_check
          %p316 = pneg %p76
        $region22: #{encoder_forward.1} parent=15 // pred_check_branch
          %318 = sbr.rel (%p316) target = $region24
        $region23: #{encoder_forward.1} parent=15 // pred_region
          %p319 = scmp.lt.s32.totalorder %s25, 1
          %s320 = scalar_select %p319, %s25, 1
          %s321 = scalar_lea.vmem %s1, %s320
        $region24: #{encoder_forward.1} parent=15 // pred_fallthru
          _
        // Predicated region
        $region25: #{encoder_forward.1} parent=15 // pred_check
          %p322 = pneg %p102
        $region26: #{encoder_forward.1} parent=15 // pred_check_branch
          %324 = sbr.rel (%p322) target = $region28
        $region27: #{encoder_forward.1} parent=15 // pred_region
          %p325 = scmp.lt.s32.totalorder %s26, 1
          %s326 = scalar_select %p325, %s26, 1
          %s327 = smul.addr %s326, 4
          %s328 = smul.addr %s327, 4
          %s329 = scalar_lea.vmem %s2, %s328
        $region28: #{encoder_forward.1} parent=15 // pred_fallthru
          _
        // Predicated region
        $region29: #{encoder_forward.1} parent=15 // pred_check
          %p330 = pneg %p128
        $region30: #{encoder_forward.1} parent=15 // pred_check_branch
          %332 = sbr.rel (%p330) target = $region32
        $region31: #{encoder_forward.1} parent=15 // pred_region
          %p333 = scmp.lt.s32.totalorder %s26, 1
          %s334 = scalar_select %p333, %s26, 1
          %s335 = smul.addr %s334, 4
          %s336 = smul.addr %s335, 4
          %s337 = scalar_lea.vmem %s3, %s336
        $region32: #{encoder_forward.1} parent=15 // pred_fallthru
          _
        // Predicated region
        $region33: #{encoder_forward.1} parent=15 // pred_check
          %p338 = pneg %p154
        $region34: #{encoder_forward.1} parent=15 // pred_check_branch
          %340 = sbr.rel (%p338) target = $region36
        $region35: #{encoder_forward.1} parent=15 // pred_region
          %p341 = scmp.lt.s32.totalorder %s26, 1
          %s342 = scalar_select %p341, %s26, 1
          %s343 = smul.addr %s342, 4
          %s344 = smul.addr %s343, 4
          %s345 = scalar_lea.vmem %s4, %s344
        $region36: #{encoder_forward.1} parent=15 // pred_fallthru
          _
        // Predicated region
        $region37: #{encoder_forward.1} parent=15 // pred_check
          %p346 = pneg %p180
        $region38: #{encoder_forward.1} parent=15 // pred_check_branch
          %348 = sbr.rel (%p346) target = $region40
        $region39: #{encoder_forward.1} parent=15 // pred_region
          %p349 = scmp.lt.s32.totalorder %s26, 1
          %s350 = scalar_select %p349, %s26, 1
          %s351 = smul.addr %s350, 8
          %s352 = smul.addr %s351, 4
          %s353 = scalar_lea.vmem %s5, %s352
        $region40: #{encoder_forward.1} parent=15 // pred_fallthru
          _
        // Predicated region
        $region41: #{encoder_forward.1} parent=15 // pred_check
          %p354 = pneg %p206
        $region42: #{encoder_forward.1} parent=15 // pred_check_branch
          %356 = sbr.rel (%p354) target = $region44
        $region43: #{encoder_forward.1} parent=15 // pred_region
          %p357 = scmp.lt.s32.totalorder %s26, 1
          %s358 = scalar_select %p357, %s26, 1
          %s359 = scalar_lea.vmem %s6, %s358
        $region44: #{encoder_forward.1} parent=15 // pred_fallthru
          _
        // Predicated region
        $region45: #{encoder_forward.1} parent=15 // pred_check
          %p360 = pneg %p232
        $region46: #{encoder_forward.1} parent=15 // pred_check_branch
          %362 = sbr.rel (%p360) target = $region48
        $region47: #{encoder_forward.1} parent=15 // pred_region
          %p363 = scmp.lt.s32.totalorder %s26, 1
          %s364 = scalar_select %p363, %s26, 1
          %s365 = scalar_lea.vmem %s7, %s364
        $region48: #{encoder_forward.1} parent=15 // pred_fallthru
          _
        // Predicated region
        $region49: #{encoder_forward.1} parent=15 // pred_check
          %p366 = pneg %p258
        $region50: #{encoder_forward.1} parent=15 // pred_check_branch
          %368 = sbr.rel (%p366) target = $region52
        $region51: #{encoder_forward.1} parent=15 // pred_region
          %p369 = scmp.lt.s32.totalorder %s26, 1
          %s370 = scalar_select %p369, %s26, 1
          %s371 = smul.addr %s370, 8
          %s372 = scalar_lea.vmem %s8, %s371
        $region52: #{encoder_forward.1} parent=15 // pred_fallthru
          _
      $region16: #{encoder_forward.1} parent=5 // pred_fallthru
        _
      %p373 = scmp.le.s32.totalorder 1, %s18
      %p374 = scmp.lt.s32.totalorder %s18, 5
      %p375 = pnand %p373, %p374
      %p376 = pneg %p375
      // Predicated region
      $region53: #{encoder_forward.1} parent=5 // pred_check
        _
      $region54: #{encoder_forward.1} parent=5 // pred_check_branch
        %378 = sbr.rel (%p375) target = $region56
      $region55: #{encoder_forward.1} parent=5 // pred_region
        %s379 = ssub.s32 %s18, 1
        %p380 = scmp.lt.s32.totalorder %s27, 1
        %s381 = scalar_select %p380, %s27, 1
        %s382 = smul.addr %s381, 8
        %s383 = scalar_lea.vmem %s0, %s382
        %p384 = pneg %p56
        %p385 = pneg %p53
        %p386 = scmp.lt.s32.totalorder %s27, 1
        %s387 = scalar_select %p386, %s27, 1
        %s388 = scalar_lea.vmem %s1, %s387
        %p389 = pneg %p82
        %p390 = pneg %p79
        %p391 = scmp.lt.s32.totalorder %s28, 1
        %s392 = scalar_select %p391, %s28, 1
        %s393 = smul.addr %s392, 4
        %s394 = smul.addr %s393, 4
        %s395 = scalar_lea.vmem %s2, %s394
        %p396 = pneg %p108
        %p397 = pneg %p105
        %p398 = scmp.lt.s32.totalorder %s28, 1
        %s399 = scalar_select %p398, %s28, 1
        %s400 = smul.addr %s399, 4
        %s401 = smul.addr %s400, 4
        %s402 = scalar_lea.vmem %s3, %s401
        %p403 = pneg %p134
        %p404 = pneg %p131
        %p405 = scmp.lt.s32.totalorder %s28, 1
        %s406 = scalar_select %p405, %s28, 1
        %s407 = smul.addr %s406, 4
        %s408 = smul.addr %s407, 4
        %s409 = scalar_lea.vmem %s4, %s408
        %p410 = pneg %p160
        %p411 = pneg %p157
        %p412 = scmp.lt.s32.totalorder %s28, 1
        %s413 = scalar_select %p412, %s28, 1
        %s414 = smul.addr %s413, 8
        %s415 = smul.addr %s414, 4
        %s416 = scalar_lea.vmem %s5, %s415
        %p417 = pneg %p186
        %p418 = pneg %p183
        %p419 = scmp.lt.s32.totalorder %s28, 1
        %s420 = scalar_select %p419, %s28, 1
        %s421 = scalar_lea.vmem %s6, %s420
        %p422 = pneg %p212
        %p423 = pneg %p209
        %p424 = scmp.lt.s32.totalorder %s28, 1
        %s425 = scalar_select %p424, %s28, 1
        %s426 = scalar_lea.vmem %s7, %s425
        %p427 = pneg %p238
        %p428 = pneg %p235
        %p429 = scmp.lt.s32.totalorder %s28, 1
        %s430 = scalar_select %p429, %s28, 1
        %s431 = smul.addr %s430, 8
        %s432 = scalar_lea.vmem %s8, %s431
        %p433 = pneg %p264
        %p434 = pneg %p261
        %p435 = pneg %p290
        %p436 = pneg %p287
        %s437 = sand.u32 %s277, 1
        %s438 = scalar_lea.sflag [#allocation4], %s437
        %s439 = sand.u32 %s277, 1
        %s440 = smul.addr %s439, 8
        %s441 = scalar_lea.vmem [#allocation3], %s440
        %p442 = scmp.lt.s32.totalorder %s27, 1
        %s443 = scalar_select %p442, %s27, 1
        %s444 = smul.addr %s443, 8
        %s445 = scalar_lea.vmem %s0, %s444
        %p446 = scmp.lt.s32.totalorder %s27, 1
        %s447 = scalar_select %p446, %s27, 1
        %s448 = scalar_lea.vmem %s1, %s447
        %p449 = scmp.lt.s32.totalorder %s28, 1
        %s450 = scalar_select %p449, %s28, 1
        %s451 = smul.addr %s450, 4
        %s452 = smul.addr %s451, 4
        %s453 = scalar_lea.vmem %s2, %s452
        %p454 = scmp.lt.s32.totalorder %s28, 1
        %s455 = scalar_select %p454, %s28, 1
        %s456 = smul.addr %s455, 4
        %s457 = smul.addr %s456, 4
        %s458 = scalar_lea.vmem %s3, %s457
        %p459 = scmp.lt.s32.totalorder %s28, 1
        %s460 = scalar_select %p459, %s28, 1
        %s461 = smul.addr %s460, 4
        %s462 = smul.addr %s461, 4
        %s463 = scalar_lea.vmem %s4, %s462
        %p464 = scmp.lt.s32.totalorder %s28, 1
        %s465 = scalar_select %p464, %s28, 1
        %s466 = smul.addr %s465, 8
        %s467 = smul.addr %s466, 4
        %s468 = scalar_lea.vmem %s5, %s467
        %p469 = scmp.lt.s32.totalorder %s28, 1
        %s470 = scalar_select %p469, %s28, 1
        %s471 = scalar_lea.vmem %s6, %s470
        %p472 = scmp.lt.s32.totalorder %s28, 1
        %s473 = scalar_select %p472, %s28, 1
        %s474 = scalar_lea.vmem %s7, %s473
        %p475 = scmp.lt.s32.totalorder %s28, 1
        %s476 = scalar_select %p475, %s28, 1
        %s477 = smul.addr %s476, 8
        %s478 = scalar_lea.vmem %s8, %s477
        %p480 = scmp.eq.s32.totalorder %s28, 0
        // Predicated region
        $region57: #{encoder_forward.1} parent=55 // pred_check
          %p481 = pneg %p480
        $region58: #{encoder_forward.1} parent=55 // pred_check_branch
          %483 = sbr.rel (%p481) target = $region60
        $region59: #{encoder_forward.1} parent=55 // pred_region
          %v484 = vld [vmem:[%s445] sm:$0xff]
          %vm485 = vcmask 261120
          %486 = vst.msk [vmem:[#allocation2] sm:$0xff] %vm485, %v484
        $region60: #{encoder_forward.1} parent=55 // pred_fallthru
          _
        %v487 = vld [vmem:[#allocation2] sm:$0xff]
        %v488 = vpack.c.bf16 %v487, %v487
        %v489 = vld [vmem:[%s453] sm:$0xf]
        %v490 = vld [vmem:[%s453 + $0x4] sm:$0xf]
        %v491 = vld [vmem:[%s453 + $0x8] sm:$0xf]
        %v492 = vld [vmem:[%s453 + $0xc] sm:$0xf]
        %v493 = vld [vmem:[%s471] sm:$0x1]
        %v495 = vperm.slane %v493, 0
        %v501 = vunpack.c.l.b16 %v489
        %v502 = vunpack.c.l.b16 %v490
        %v503 = vunpack.c.l.b16 %v491
        %v504 = vunpack.c.l.b16 %v492
        %v505 = vpack.c.b16 %v502, %v501
        %v506 = vpack.c.b16 %v504, %v503
        %vm509 = vcmask 261120
        %v511 = vsel %vm509, %v488, 0
        %513 = vmatpush.bf16.msra.mxu0 0
        %514 = vmatpush.bf16.msra.mxu0 0
        %515 = vmatpush.bf16.msra.mxu0 0
        %516 = vmatpush.bf16.msra.mxu0 0
        %517 = vmatpush.bf16.msra.mxu0 0
        %518 = vmatpush.bf16.msra.mxu0 0
        %519 = vmatpush.bf16.msra.mxu0 %v506
        %520 = vmatpush.bf16.msra.mxu0 %v505
        %521 = vmatmul.bf16.gmra.mxu0 %v511
        %v522 = vpop.f32.mrf.mxu0
        %v523 = vadd.f32 %v495, %v522
        %v524 = vpop.f32.mrf.mxu0
        %525 = vdwg.mxu0
        %v526 = vld [vmem:[%s448] sm:$0x1]
        %v527 = vpack.c.bf16 %v523, %v523
        %v529 = vperm.slane %v526, 0
        %v532 = vunpack.c.l.b16 %v527
        %v533 = vpack.c.b16 %v532, %v532
        %534 = vrot.lane.b32.xlu0 %v533, 96
        %v535 = vpop.permute.xlu0 %534
        %vm536 = vcmask 64512
        %v538 = vsel %vm536, %v527, 0
        %v541 = vsel %vm536, %v535, 0
        %543 = vmatpush.bf16.xpose.msra.mxu0 0
        %544 = vmatpush.bf16.xpose.msra.mxu0 0
        %545 = vmatpush.bf16.xpose.msra.mxu0 0
        %546 = vmatpush.bf16.xpose.msra.mxu0 0
        %547 = vmatpush.bf16.xpose.msra.mxu0 0
        %548 = vmatpush.bf16.xpose.msra.mxu0 0
        %549 = vmatpush.bf16.xpose.msra.mxu0 0
        %550 = vmatpush.bf16.xpose.msra.mxu0 %v541
        %551 = vmatmul.bf16.gmra.mxu0 %v538
        %v552 = vpop.f32.mrf.mxu0
        %v553 = vadd.f32 %v529, %v552
        %v554 = vpop.f32.mrf.mxu0
        %555 = vdwg.mxu0
        %v556 = vsel %vm536, %v553, -inf
        %557 = vmax.xlane.f32.xlu0 %v556
        %v558 = vpop.xlane.xlu0 %557
        %v559 = vsub.f32 %v553, %v558
        %v560 = vmul.f32 %v559, 1.442695
        %v561 = vpow.pop %v560
        %v562 = vsel %vm536, %v561, 0.0
        %563 = vadd.xlane.f32.xlu0 %v562
        %v564 = vpop.xlane.xlu0 %563
        %v565 = vrcp.pop %v564
        %v566 = vmul.f32 %v561, %v565
        %v567 = vpack.c.bf16 %v566, %v566
        %568 = vrot.lane.b32.xlu0 %v533, 64
        %v569 = vpop.permute.xlu0 %568
        %v571 = vsel %vm536, %v567, 0
        %vm573 = vcmask 1043456
        %v575 = vsel %vm573, %v569, 0
        %577 = vmatpush.bf16.msra.mxu0 0
        %578 = vmatpush.bf16.msra.mxu0 0
        %579 = vmatpush.bf16.msra.mxu0 0
        %580 = vmatpush.bf16.msra.mxu0 0
        %581 = vmatpush.bf16.msra.mxu0 0
        %582 = vmatpush.bf16.msra.mxu0 0
        %583 = vmatpush.bf16.msra.mxu0 0
        %584 = vmatpush.bf16.msra.mxu0 %v575
        %585 = vmatmul.bf16.gmra.mxu0 %v571
        %v586 = vpop.f32.mrf.mxu0
        %v587 = vadd.f32 0.0, %v586
        %v588 = vpop.f32.mrf.mxu0
        %589 = vdwg.mxu0
        %590 = vrot.lane.b32.xlu0 %v533, 120
        %v591 = vpop.permute.xlu0 %590
        %592 = vrot.lane.b32.xlu0 %v533, 88
        %v593 = vpop.permute.xlu0 %592
        %v595 = vsel %vm536, %v591, 0
        %v598 = vsel %vm536, %v593, 0
        %600 = vmatpush.bf16.xpose.msra.mxu0 0
        %601 = vmatpush.bf16.xpose.msra.mxu0 0
        %602 = vmatpush.bf16.xpose.msra.mxu0 0
        %603 = vmatpush.bf16.xpose.msra.mxu0 0
        %604 = vmatpush.bf16.xpose.msra.mxu0 0
        %605 = vmatpush.bf16.xpose.msra.mxu0 0
        %606 = vmatpush.bf16.xpose.msra.mxu0 0
        %607 = vmatpush.bf16.xpose.msra.mxu0 %v598
        %608 = vmatmul.bf16.gmra.mxu0 %v595
        %v609 = vpop.f32.mrf.mxu0
        %v610 = vadd.f32 %v529, %v609
        %v611 = vpop.f32.mrf.mxu0
        %612 = vdwg.mxu0
        %v613 = vsel %vm536, %v610, -inf
        %614 = vmax.xlane.f32.xlu0 %v613
        %v615 = vpop.xlane.xlu0 %614
        %v616 = vsub.f32 %v610, %v615
        %v617 = vmul.f32 %v616, 1.442695
        %v618 = vpow.pop %v617
        %v619 = vsel %vm536, %v618, 0.0
        %620 = vadd.xlane.f32.xlu0 %v619
        %v621 = vpop.xlane.xlu0 %620
        %v622 = vrcp.pop %v621
        %v623 = vmul.f32 %v618, %v622
        %v624 = vpack.c.bf16 %v623, %v623
        %625 = vrot.lane.b32.xlu0 %v533, 56
        %v626 = vpop.permute.xlu0 %625
        %v628 = vsel %vm536, %v624, 0
        %v631 = vsel %vm573, %v626, 0
        %633 = vmatpush.bf16.msra.mxu0 0
        %634 = vmatpush.bf16.msra.mxu0 0
        %635 = vmatpush.bf16.msra.mxu0 0
        %636 = vmatpush.bf16.msra.mxu0 0
        %637 = vmatpush.bf16.msra.mxu0 0
        %638 = vmatpush.bf16.msra.mxu0 0
        %639 = vmatpush.bf16.msra.mxu0 0
        %640 = vmatpush.bf16.msra.mxu0 %v631
        %641 = vmatmul.bf16.gmra.mxu0 %v628
        %v642 = vpop.f32.mrf.mxu0
        %v643 = vadd.f32 0.0, %v642
        %v644 = vpop.f32.mrf.mxu0
        %645 = vdwg.mxu0
        %646 = vrot.lane.b32.xlu0 %v533, 112
        %v647 = vpop.permute.xlu0 %646
        %648 = vrot.lane.b32.xlu0 %v533, 80
        %v649 = vpop.permute.xlu0 %648
        %v651 = vsel %vm536, %v647, 0
        %v654 = vsel %vm536, %v649, 0
        %656 = vmatpush.bf16.xpose.msra.mxu0 0
        %657 = vmatpush.bf16.xpose.msra.mxu0 0
        %658 = vmatpush.bf16.xpose.msra.mxu0 0
        %659 = vmatpush.bf16.xpose.msra.mxu0 0
        %660 = vmatpush.bf16.xpose.msra.mxu0 0
        %661 = vmatpush.bf16.xpose.msra.mxu0 0
        %662 = vmatpush.bf16.xpose.msra.mxu0 0
        %663 = vmatpush.bf16.xpose.msra.mxu0 %v654
        %664 = vmatmul.bf16.gmra.mxu0 %v651
        %v665 = vpop.f32.mrf.mxu0
        %v666 = vadd.f32 %v529, %v665
        %v667 = vpop.f32.mrf.mxu0
        %668 = vdwg.mxu0
        %v669 = vsel %vm536, %v666, -inf
        %670 = vmax.xlane.f32.xlu0 %v669
        %v671 = vpop.xlane.xlu0 %670
        %v672 = vsub.f32 %v666, %v671
        %v673 = vmul.f32 %v672, 1.442695
        %v674 = vpow.pop %v673
        %v675 = vsel %vm536, %v674, 0.0
        %676 = vadd.xlane.f32.xlu0 %v675
        %v677 = vpop.xlane.xlu0 %676
        %v678 = vrcp.pop %v677
        %v679 = vmul.f32 %v674, %v678
        %v680 = vpack.c.bf16 %v679, %v679
        %681 = vrot.lane.b32.xlu0 %v533, 48
        %v682 = vpop.permute.xlu0 %681
        %v684 = vsel %vm536, %v680, 0
        %v687 = vsel %vm573, %v682, 0
        %689 = vmatpush.bf16.msra.mxu0 0
        %690 = vmatpush.bf16.msra.mxu0 0
        %691 = vmatpush.bf16.msra.mxu0 0
        %692 = vmatpush.bf16.msra.mxu0 0
        %693 = vmatpush.bf16.msra.mxu0 0
        %694 = vmatpush.bf16.msra.mxu0 0
        %695 = vmatpush.bf16.msra.mxu0 0
        %696 = vmatpush.bf16.msra.mxu0 %v687
        %697 = vmatmul.bf16.gmra.mxu0 %v684
        %v698 = vpop.f32.mrf.mxu0
        %v699 = vadd.f32 0.0, %v698
        %v700 = vpop.f32.mrf.mxu0
        %701 = vdwg.mxu0
        %702 = vrot.lane.b32.xlu0 %v533, 104
        %v703 = vpop.permute.xlu0 %702
        %704 = vrot.lane.b32.xlu0 %v533, 72
        %v705 = vpop.permute.xlu0 %704
        %v707 = vsel %vm536, %v703, 0
        %v710 = vsel %vm536, %v705, 0
        %712 = vmatpush.bf16.xpose.msra.mxu0 0
        %713 = vmatpush.bf16.xpose.msra.mxu0 0
        %714 = vmatpush.bf16.xpose.msra.mxu0 0
        %715 = vmatpush.bf16.xpose.msra.mxu0 0
        %716 = vmatpush.bf16.xpose.msra.mxu0 0
        %717 = vmatpush.bf16.xpose.msra.mxu0 0
        %718 = vmatpush.bf16.xpose.msra.mxu0 0
        %719 = vmatpush.bf16.xpose.msra.mxu0 %v710
        %720 = vmatmul.bf16.gmra.mxu0 %v707
        %v721 = vpop.f32.mrf.mxu0
        %v722 = vadd.f32 %v529, %v721
        %v723 = vpop.f32.mrf.mxu0
        %724 = vdwg.mxu0
        %v725 = vsel %vm536, %v722, -inf
        %726 = vmax.xlane.f32.xlu0 %v725
        %v727 = vpop.xlane.xlu0 %726
        %v728 = vsub.f32 %v722, %v727
        %v729 = vmul.f32 %v728, 1.442695
        %v730 = vpow.pop %v729
        %v731 = vsel %vm536, %v730, 0.0
        %732 = vadd.xlane.f32.xlu0 %v731
        %v733 = vpop.xlane.xlu0 %732
        %v734 = vrcp.pop %v733
        %v735 = vmul.f32 %v730, %v734
        %v736 = vpack.c.bf16 %v735, %v735
        %737 = vrot.lane.b32.xlu0 %v533, 40
        %v738 = vpop.permute.xlu0 %737
        %v740 = vsel %vm536, %v736, 0
        %v743 = vsel %vm573, %v738, 0
        %745 = vmatpush.bf16.msra.mxu0 0
        %746 = vmatpush.bf16.msra.mxu0 0
        %747 = vmatpush.bf16.msra.mxu0 0
        %748 = vmatpush.bf16.msra.mxu0 0
        %749 = vmatpush.bf16.msra.mxu0 0
        %750 = vmatpush.bf16.msra.mxu0 0
        %751 = vmatpush.bf16.msra.mxu0 0
        %752 = vmatpush.bf16.msra.mxu0 %v743
        %753 = vmatmul.bf16.gmra.mxu0 %v740
        %v754 = vpop.f32.mrf.mxu0
        %v755 = vadd.f32 0.0, %v754
        %v756 = vpop.f32.mrf.mxu0
        %757 = vdwg.mxu0
        %759 = vrot.lane.b32.xlu0 %v643, 8
        %v760 = vpop.permute.xlu0 %759
        %763 = vrot.lane.b32.xlu0 %v699, 16
        %v764 = vpop.permute.xlu0 %763
        %767 = vrot.lane.b32.xlu0 %v755, 24
        %v768 = vpop.permute.xlu0 %767
        %v770 = vsel %vm536, %v587, %v760
        %vm771 = vcmask 130048
        %v772 = vsel %vm771, %v770, %v764
        %vm773 = vcmask 195584
        %v774 = vsel %vm773, %v772, %v768
        %v775 = vpack.c.bf16 %v774, %v774
        %v776 = vld [vmem:[%s458] sm:$0xf]
        %v777 = vld [vmem:[%s458 + $0x4] sm:$0xf]
        %v778 = vld [vmem:[%s458 + $0x8] sm:$0xf]
        %v779 = vld [vmem:[%s458 + $0xc] sm:$0xf]
        %v780 = vld [vmem:[%s478] sm:$0x1]
        %v781 = vperm.slane %v780, 0
        %v786 = vunpack.c.l.b16 %v776
        %v787 = vunpack.c.l.b16 %v777
        %v788 = vunpack.c.l.b16 %v778
        %v789 = vunpack.c.l.b16 %v779
        %v790 = vpack.c.b16 %v787, %v786
        %v791 = vpack.c.b16 %v789, %v788
        %v795 = vsel %vm509, %v775, 0
        %797 = vmatpush.bf16.msra.mxu0 0
        %798 = vmatpush.bf16.msra.mxu0 0
        %799 = vmatpush.bf16.msra.mxu0 0
        %800 = vmatpush.bf16.msra.mxu0 0
        %801 = vmatpush.bf16.msra.mxu0 0
        %802 = vmatpush.bf16.msra.mxu0 0
        %803 = vmatpush.bf16.msra.mxu0 %v791
        %804 = vmatpush.bf16.msra.mxu0 %v790
        %805 = vmatmul.bf16.gmra.mxu0 %v795
        %v806 = vpop.f32.mrf.mxu0
        %v807 = vadd.f32 %v781, %v806
        %v808 = vpop.f32.mrf.mxu0
        %809 = vdwg.mxu0
        %v810 = vadd.f32 %v487, %v807
        %v811 = vld [vmem:[%s478 + $0x1] sm:$0x1]
        %v812 = vld [vmem:[%s478 + $0x2] sm:$0x1]
        %v813 = vsel %vm509, %v810, 0.0
        %814 = vadd.xlane.f32.xlu0 %v813
        %v815 = vpop.xlane.xlu0 %814
        %v816 = vrcp.pop 32.0
        %v817 = vmul.f32 32.0, %v816
        %v818 = vsub.f32 1.0, %v817
        %v819 = vmul.f32 %v816, %v818
        %v820 = vadd.f32 %v816, %v819
        %vm821 = vweird.f32 %v816
        %v822 = vsel %vm821, %v816, %v820
        %v823 = vmul.f32 %v815, %v822
        %v824 = vsub.f32 %v810, %v823
        %v825 = vmul.f32 %v824, %v824
        %v826 = vsel %vm509, %v825, 0.0
        %827 = vadd.xlane.f32.xlu0 %v826
        %v828 = vpop.xlane.xlu0 %827
        %v829 = vmul.f32 %v828, %v822
        %v830 = vperm.slane %v811, 0
        %v831 = vmul.f32 %v830, %v824
        %v832 = vadd.f32 %v829, 1e-12
        %v833 = vrsqrt.pop %v832
        %v834 = vmul.f32 %v833, %v832
        %v835 = vmul.f32 %v834, %v833
        %v836 = vmul.f32 0.5, %v835
        %v837 = vsub.f32 1.5, %v836
        %v838 = vmul.f32 %v833, %v837
        %vm839 = vweird.f32 %v832
        %vm840 = vweird.f32 %v833
        %vm841 = vmor %vm839, %vm840
        %v842 = vsel %vm841, %v833, %v838
        %v843 = vmul.f32 %v831, %v842
        %v844 = vperm.slane %v812, 0
        %v845 = vadd.f32 %v843, %v844
        %v846 = vpack.c.bf16 %v845, %v845
        %v847 = vld [vmem:[%s463] sm:$0xf]
        %v848 = vld [vmem:[%s463 + $0x4] sm:$0xf]
        %v849 = vld [vmem:[%s463 + $0x8] sm:$0xf]
        %v850 = vld [vmem:[%s463 + $0xc] sm:$0xf]
        %v851 = vld [vmem:[%s474] sm:$0x1]
        %v853 = vperm.slane %v851, 0
        %v859 = vunpack.c.l.b16 %v847
        %v860 = vunpack.c.l.b16 %v848
        %v861 = vunpack.c.l.b16 %v849
        %v862 = vunpack.c.l.b16 %v850
        %v863 = vpack.c.b16 %v860, %v859
        %v864 = vpack.c.b16 %v862, %v861
        %v868 = vsel %vm509, %v846, 0
        %870 = vmatpush.bf16.msra.mxu0 0
        %871 = vmatpush.bf16.msra.mxu0 0
        %872 = vmatpush.bf16.msra.mxu0 0
        %873 = vmatpush.bf16.msra.mxu0 0
        %874 = vmatpush.bf16.msra.mxu0 0
        %875 = vmatpush.bf16.msra.mxu0 0
        %876 = vmatpush.bf16.msra.mxu0 %v864
        %877 = vmatpush.bf16.msra.mxu0 %v863
        %878 = vmatmul.bf16.gmra.mxu0 %v868
        %v879 = vpop.f32.mrf.mxu0
        %v880 = vadd.f32 %v853, %v879
        %v881 = vpop.f32.mrf.mxu0
        %882 = vdwg.mxu0
        %v883 = vmax.f32 %v880, 0.0
        %v884 = vpack.c.bf16 %v883, %v883
        %v885 = vld [vmem:[%s468] sm:$0xf]
        %v886 = vld [vmem:[%s468 + $0x4] sm:$0xf]
        %v887 = vld [vmem:[%s468 + $0x8] sm:$0xf]
        %v888 = vld [vmem:[%s468 + $0xc] sm:$0xf]
        %v889 = vld [vmem:[%s468 + $0x10] sm:$0xf]
        %v890 = vld [vmem:[%s468 + $0x14] sm:$0xf]
        %v891 = vld [vmem:[%s468 + $0x18] sm:$0xf]
        %v892 = vld [vmem:[%s468 + $0x1c] sm:$0xf]
        %v893 = vld [vmem:[%s478 + $0x3] sm:$0x1]
        %v894 = vperm.slane %v893, 0
        %v903 = vunpack.c.l.b16 %v885
        %v904 = vunpack.c.l.b16 %v886
        %v905 = vunpack.c.l.b16 %v887
        %v906 = vunpack.c.l.b16 %v888
        %v907 = vunpack.c.l.b16 %v889
        %v908 = vunpack.c.l.b16 %v890
        %v909 = vunpack.c.l.b16 %v891
        %v910 = vunpack.c.l.b16 %v892
        %v911 = vpack.c.b16 %v904, %v903
        %v912 = vpack.c.b16 %v906, %v905
        %v913 = vpack.c.b16 %v908, %v907
        %v914 = vpack.c.b16 %v910, %v909
        %vm919 = vcmask 523264
        %v921 = vsel %vm919, %v884, 0
        %923 = vmatpush.bf16.msra.mxu0 0
        %924 = vmatpush.bf16.msra.mxu0 0
        %925 = vmatpush.bf16.msra.mxu0 0
        %926 = vmatpush.bf16.msra.mxu0 0
        %927 = vmatpush.bf16.msra.mxu0 %v914
        %928 = vmatpush.bf16.msra.mxu0 %v913
        %929 = vmatpush.bf16.msra.mxu0 %v912
        %930 = vmatpush.bf16.msra.mxu0 %v911
        %931 = vmatmul.bf16.gmra.mxu0 %v921
        %v932 = vpop.f32.mrf.mxu0
        %v933 = vadd.f32 %v894, %v932
        %v934 = vpop.f32.mrf.mxu0
        %935 = vdwg.mxu0
        %v936 = vadd.f32 %v845, %v933
        %v937 = vld [vmem:[%s478 + $0x4] sm:$0x1]
        %v938 = vld [vmem:[%s478 + $0x5] sm:$0x1]
        %v939 = vsel %vm509, %v936, 0.0
        %940 = vadd.xlane.f32.xlu0 %v939
        %v941 = vpop.xlane.xlu0 %940
        %v942 = vmul.f32 %v941, %v822
        %v943 = vsub.f32 %v936, %v942
        %v944 = vmul.f32 %v943, %v943
        %v945 = vsel %vm509, %v944, 0.0
        %946 = vadd.xlane.f32.xlu0 %v945
        %v947 = vpop.xlane.xlu0 %946
        %v948 = vmul.f32 %v947, %v822
        %v949 = vperm.slane %v937, 0
        %v950 = vmul.f32 %v949, %v943
        %v951 = vadd.f32 %v948, 1e-12
        %v952 = vrsqrt.pop %v951
        %v953 = vmul.f32 %v952, %v951
        %v954 = vmul.f32 %v953, %v952
        %v955 = vmul.f32 0.5, %v954
        %v956 = vsub.f32 1.5, %v955
        %v957 = vmul.f32 %v952, %v956
        %vm958 = vweird.f32 %v951
        %vm959 = vweird.f32 %v952
        %vm960 = vmor %vm958, %vm959
        %v961 = vsel %vm960, %v952, %v957
        %v962 = vmul.f32 %v950, %v961
        %v963 = vperm.slane %v938, 0
        %v964 = vadd.f32 %v962, %v963
        %965 = vst.msk [vmem:[#allocation2] sm:$0xff] %vm509, %v964
        %p966 = scmp.eq.s32.totalorder %s28, 1
        // Predicated region
        $region61: #{encoder_forward.1} parent=55 // pred_check
          %p967 = pneg %p966
        $region62: #{encoder_forward.1} parent=55 // pred_check_branch
          %969 = sbr.rel (%p967) target = $region64
        $region63: #{encoder_forward.1} parent=55 // pred_region
          %970 = vst.msk [vmem:[%s441] sm:$0xff] %vm509, %v964
        $region64: #{encoder_forward.1} parent=55 // pred_fallthru
          _
        %s971 = sand.u32 %s277, 1
        %s972 = scalar_lea.sflag [#allocation4], %s971
        %s973 = sand.u32 %s277, 1
        %s974 = smul.addr %s973, 8
        %s975 = scalar_lea.vmem [#allocation3], %s974
        // Predicated region
        $region65: #{encoder_forward.1} parent=55 // pred_check
          %p976 = pneg %p287
        $region66: #{encoder_forward.1} parent=55 // pred_check_branch
          %978 = sbr.rel (%p976) target = $region68
        $region67: #{encoder_forward.1} parent=55 // pred_region
          %980 = vsyncadd %s972, 0
          %s981 = smul.addr %s27, 8
          %s982 = scalar_lea.hbm %s9, %s981
          %s984 = sshll.u32 %s975, 4
          %s985 = int_to_ptr.vmem [resolvable:$true] %s984
          %s986 = sshll.u32 %s982, 4
          %s987 = int_to_ptr.hbm [resolvable:$true] %s986
          %989 = dma.vmem_to_hbm [thread:$0]  %s985, 128, %s987, %s972
        $region68: #{encoder_forward.1} parent=55 // pred_fallthru
          _
      $region56: #{encoder_forward.1} parent=5 // pred_fallthru
        _
      %p990 = scmp.le.s32.totalorder 2, %s18
      // Predicated region
      $region69: #{encoder_forward.1} parent=5 // pred_check
        %p991 = pneg %p990
      $region70: #{encoder_forward.1} parent=5 // pred_check_branch
        %993 = sbr.rel (%p991) target = $region72
      $region71: #{encoder_forward.1} parent=5 // pred_region
        %s994 = ssub.s32 %s18, 2
        // Predicated region
        $region73: #{encoder_forward.1} parent=71 // pred_check
          %p995 = pneg %p293
        $region74: #{encoder_forward.1} parent=71 // pred_check_branch
          %997 = sbr.rel (%p995) target = $region76
        $region75: #{encoder_forward.1} parent=71 // pred_region
          %s998 = sand.u32 %s278, 1
          %s999 = scalar_lea.sflag [#allocation4], %s998
          %s1000 = sand.u32 %s278, 1
          %s1001 = smul.addr %s1000, 8
          %s1002 = scalar_lea.vmem [#allocation3], %s1001
          %1004 = dma.done %s999, 128
        $region76: #{encoder_forward.1} parent=71 // pred_fallthru
          _
      $region72: #{encoder_forward.1} parent=5 // pred_fallthru
        _
    $region6: #{encoder_forward.1} parent=1 // loop_footer
      %s22 = sadd.s32 1, %s18
    $region7: #{encoder_forward.1} parent=1 // loop_footer_branch
      %17 = sbr.rel target = $region3
    $region8: #{encoder_forward.1} parent=1 // loop_exit
      _
    %1005 = vsyncpa [#allocation4], 1
    %s1006 = scalar_lea.sflag [#allocation4], 1
    %1007 = vsyncpa %s1006, 1

</llo_original>
